<compile_context>
chip_gen: v7x
topology: tpu7x:2x2x1
jax: 0.10.0
libtpu: 0.0.40
codegen_flags: <defaults>
</compile_context>

<pallas_src>
import functools

import jax
import jax.numpy as jnp
from jax.experimental import pallas as pl
from jax.experimental.pallas import tpu as pltpu

IN_DIM = 3072
LANE = 128


def _round_up(x, m):
    return ((x + m - 1) // m) * m


def mlp_kernel(x_ref, w1_ref, w2_ref, w3_ref, o_ref):
    # x streams from HBM in f32; cast to bf16 in-kernel (VPU slot has slack,
    # and this avoids a separate wrapper-side cast pass over x).
    x = x_ref[...].astype(jnp.bfloat16)
    # fc1 (input_mult**0.5 already folded into w1) + ReLU in f32.
    h = jnp.dot(x, w1_ref[...], preferred_element_type=jnp.float32)
    h = jnp.maximum(h, 0.0).astype(jnp.bfloat16)
    # fc2 + ReLU.
    h = jnp.dot(h, w2_ref[...], preferred_element_type=jnp.float32)
    h = jnp.maximum(h, 0.0).astype(jnp.bfloat16)
    # fc3 (output_mult already folded into w3); lane-dense padded-N bf16 store.
    out = jnp.dot(h, w3_ref[...], preferred_element_type=jnp.float32)
    o_ref[...] = out.astype(o_ref.dtype)


def prepare_params(w1_t, w2_t, w3_t, *, input_mult=1.0, output_mult=1.0):
    """One-time weight prep, hoisted out of the per-step forward.

    Folds the forward-pass scalars into w1/w3, casts MXU operands to bf16 and
    zero-pads fc3's output dim to a full 128-lane slab (unmasked vst).
    Weights are (in_features, out_features)."""
    num_classes = w3_t.shape[1]
    n_pad = _round_up(num_classes, LANE)
    w1 = (w1_t * (input_mult ** 0.5)).astype(jnp.bfloat16)
    w2 = w2_t.astype(jnp.bfloat16)
    w3 = (w3_t * output_mult).astype(jnp.bfloat16)
    w3 = jnp.pad(w3, ((0, 0), (0, n_pad - num_classes)))
    return w1, w2, w3


@functools.partial(jax.jit, static_argnames=("num_classes", "block_b"))
def mlp_forward(x, w1, w2, w3, *, num_classes, block_b=512):
    """x: (B, 3072) f32; w1/w2/w3: prepared bf16 weights (see prepare_params).

    Returns (B, num_classes) f32."""
    B, d_in = x.shape
    assert d_in == IN_DIM
    width = w1.shape[1]
    n_pad = w3.shape[1]

    # Batch tiling:
    #  * tiles are multiples of 16 rows (native bf16 (16,128) packing),
    #  * large tiles amortize the ~0.35 us per-grid-step overhead,
    #  * >=2 tiles (>=4 at large B) so v7x's 2 TensorCores both get work,
    #  * tb sized so num_tiles * tb covers B with minimal zero padding.
    min_tiles = 1
    if B >= 512:
        min_tiles = 2
    if B >= 2048:
        min_tiles = 4
    num_tiles = max(pl.cdiv(B, block_b), min_tiles)
    tb = _round_up(pl.cdiv(B, num_tiles), 16)
    b_pad = num_tiles * tb
    if b_pad != B:
        x = jnp.pad(x, ((0, b_pad - B), (0, 0)))

    flops = 2 * b_pad * (IN_DIM * width + width * width + width * n_pad)
    bytes_accessed = (b_pad * IN_DIM * 4                    # x read (f32)
                      + (w1.size + w2.size + w3.size) * 2   # bf16 weights
                      + b_pad * n_pad * 2)                  # bf16 output write

    out = pl.pallas_call(
        mlp_kernel,
        out_shape=jax.ShapeDtypeStruct((b_pad, n_pad), jnp.bfloat16),
        grid=(num_tiles,),
        in_specs=[
            # x streams one batch tile per grid step (f32, cast in-kernel).
            pl.BlockSpec((tb, IN_DIM), lambda i: (i, 0)),
            # Weights: constant index_map -> VMEM-resident, DMA'd once.
            # TODO(synk): at width >= ~2048 single-buffer these blocks to halve
            # their VMEM footprint; irrelevant at width=128 (~0.8 MiB total).
            pl.BlockSpec((IN_DIM, width), lambda i: (0, 0)),
            pl.BlockSpec((width, width), lambda i: (0, 0)),
            pl.BlockSpec((width, n_pad), lambda i: (0, 0)),
        ],
        out_specs=pl.BlockSpec((tb, n_pad), lambda i: (i, 0)),
        compiler_params=pltpu.CompilerParams(
            # Batch tiles are independent -> v7x megacore splits them across TCs.
            dimension_semantics=("parallel",),
            # f32 x tiles at tb=512 are ~12 MiB double-buffered: above v5e's
            # 16 MiB default scoped VMEM, comfortably inside v7x's 64 MiB
            # physical / all generations' capacity.
            vmem_limit_bytes=48 * 1024 * 1024,
        ),
        cost_estimate=pl.CostEstimate(
            flops=flops, transcendentals=0, bytes_accessed=bytes_accessed),
    )(x, w1, w2, w3)
    return out[:B, :num_classes].astype(jnp.float32)


def reference_forward(x, w1_t, w2_t, w3_t, *, input_mult=1.0, output_mult=1.0):
    """Plain-JAX replica of the exact bf16-MXU / f32-accumulate path the kernel
    runs (including the bf16 output store)."""
    w1 = (w1_t * (input_mult ** 0.5)).astype(jnp.bfloat16)
    w2 = w2_t.astype(jnp.bfloat16)
    w3 = (w3_t * output_mult).astype(jnp.bfloat16)
    xb = x.astype(jnp.bfloat16)
    h = jnp.maximum(jnp.dot(xb, w1, preferred_element_type=jnp.float32), 0.0)
    h = jnp.maximum(
        jnp.dot(h.astype(jnp.bfloat16), w2, preferred_element_type=jnp.float32), 0.0)
    out = jnp.dot(h.astype(jnp.bfloat16), w3, preferred_element_type=jnp.float32)
    return out.astype(jnp.bfloat16).astype(jnp.float32)


def init_params(key, width=128, num_classes=10, input_mult=1.0):
    """Deterministic init matching MLP.reset_parameters semantics.

    kaiming_normal_(a=1, mode='fan_in') -> std = 1/sqrt(fan_in); fc_1 is then
    divided by input_mult**0.5; fc_3 weight is zeros.
    Weights returned transposed: (in_features, out_features)."""
    k1, k2 = jax.random.split(key, 2)
    std1 = 1.0 / (IN_DIM ** 0.5)
    std2 = 1.0 / (width ** 0.5)
    w1 = jax.random.normal(k1, (width, IN_DIM), dtype=jnp.float32) * std1
    w1 = w1 / (input_mult ** 0.5)
    w2 = jax.random.normal(k2, (width, width), dtype=jnp.float32) * std2
    w3 = jnp.zeros((num_classes, width), dtype=jnp.float32)
    return w1.T, w2.T, w3.T


if __name__ == "__main__":
    width = 128
    num_classes = 10
    batch = 8
    input_mult = 4.0
    output_mult = 0.5

    key = jax.random.PRNGKey(0)
    kx, kp, k3 = jax.random.split(key, 3)
    x = jax.random.normal(kx, (batch, IN_DIM), dtype=jnp.float32)
    w1_t, w2_t, w3_t = init_params(
        kp, width=width, num_classes=num_classes, input_mult=input_mult)
    # The module zero-inits fc_3; use a nonzero w3 in the test so the check
    # actually validates the fc1/fc2 path (zero w3 makes any output "pass").
    w3_t = jax.random.normal(k3, (width, num_classes), dtype=jnp.float32) / (width ** 0.5)

    # One-time weight prep (fold scales, bf16 cast, pad fc3 to 128 lanes).
    w1, w2, w3 = prepare_params(
        w1_t, w2_t, w3_t, input_mult=input_mult, output_mult=output_mult)

    out = mlp_forward(x, w1, w2, w3, num_classes=num_classes)
    out = jax.block_until_ready(out)
    assert out.shape == (batch, num_classes)

    # Check against a plain-JAX replica of the same bf16/f32-accumulate path.
    ref_bf16 = reference_forward(
        x, w1_t, w2_t, w3_t, input_mult=input_mult, output_mult=output_mult)
    assert jnp.allclose(out, ref_bf16, atol=2e-2, rtol=2e-2)

    # Loose sanity check against the full-fp32 PyTorch-semantics forward.
    h = jnp.maximum(x @ w1_t * (input_mult ** 0.5), 0.0)
    h = jnp.maximum(h @ w2_t, 0.0)
    ref_f32 = (h @ w3_t) * output_mult
    assert jnp.allclose(out, ref_f32, atol=1e-1, rtol=1e-1)

    print("KERNEL_OK")
</pallas_src>

<mosaic_0001>
module attributes {stable_mosaic.version = 11 : i64} {
  func.func @mlp_kernel(%arg0: i32, %arg1: memref<16x3072xf32, #tpu.memory_space<vmem>>, %arg2: memref<3072x128xbf16, #tpu.memory_space<vmem>>, %arg3: memref<128x128xbf16, #tpu.memory_space<vmem>>, %arg4: memref<128x128xbf16, #tpu.memory_space<vmem>>, %arg5: memref<16x128xbf16, #tpu.memory_space<vmem>>) attributes {dimension_semantics = [#tpu.dimension_semantics<parallel>], iteration_bounds = array<i64: 1>, scalar_prefetch = 0 : i64, scratch_operands = 0 : i64, tpu.core_type = #tpu.core_type<tc>, window_params = [{transform_indices = @transform_0, window_bounds = array<i64: 16, 3072>}, {pipeline_mode = #tpu.pipeline_mode<synchronous>, transform_indices = @transform_1, window_bounds = array<i64: 3072, 128>}, {pipeline_mode = #tpu.pipeline_mode<synchronous>, transform_indices = @transform_2, window_bounds = array<i64: 128, 128>}, {pipeline_mode = #tpu.pipeline_mode<synchronous>, transform_indices = @transform_3, window_bounds = array<i64: 128, 128>}, {transform_indices = @transform_4, window_bounds = array<i64: 16, 128>}]} {
    %c0 = arith.constant 0 : index
    %c0_0 = arith.constant 0 : index
    %0 = vector.load %arg1[%c0, %c0_0] : memref<16x3072xf32, #tpu.memory_space<vmem>>, vector<16x3072xf32>
    %1 = arith.truncf %0 : vector<16x3072xf32> to vector<16x3072xbf16>
    %c0_1 = arith.constant 0 : index
    %c0_2 = arith.constant 0 : index
    %2 = vector.load %arg2[%c0_1, %c0_2] : memref<3072x128xbf16, #tpu.memory_space<vmem>>, vector<3072x128xbf16>
    %cst = arith.constant dense<0.000000e+00> : vector<16x128xf32>
    %3 = tpu.matmul %1, %2, %cst {dimension_numbers = #tpu.dot_dimension_numbers<[1], [0], [0], [1], [0, 0, 1, 1], [], []>} : vector<16x3072xbf16>, vector<3072x128xbf16>, vector<16x128xf32> -> vector<16x128xf32>
    %cst_3 = arith.constant 0.000000e+00 : f32
    %4 = vector.broadcast %cst_3 : f32 to vector<16x128xf32>
    %5 = arith.maximumf %3, %4 : vector<16x128xf32>
    %6 = arith.truncf %5 : vector<16x128xf32> to vector<16x128xbf16>
    %c0_4 = arith.constant 0 : index
    %c0_5 = arith.constant 0 : index
    %7 = vector.load %arg3[%c0_4, %c0_5] : memref<128x128xbf16, #tpu.memory_space<vmem>>, vector<128x128xbf16>
    %cst_6 = arith.constant dense<0.000000e+00> : vector<16x128xf32>
    %8 = tpu.matmul %6, %7, %cst_6 {dimension_numbers = #tpu.dot_dimension_numbers<[1], [0], [0], [1], [0, 0, 1, 1], [], []>} : vector<16x128xbf16>, vector<128x128xbf16>, vector<16x128xf32> -> vector<16x128xf32>
    %cst_7 = arith.constant 0.000000e+00 : f32
    %9 = vector.broadcast %cst_7 : f32 to vector<16x128xf32>
    %10 = arith.maximumf %8, %9 : vector<16x128xf32>
    %11 = arith.truncf %10 : vector<16x128xf32> to vector<16x128xbf16>
    %c0_8 = arith.constant 0 : index
    %c0_9 = arith.constant 0 : index
    %12 = vector.load %arg4[%c0_8, %c0_9] : memref<128x128xbf16, #tpu.memory_space<vmem>>, vector<128x128xbf16>
    %cst_10 = arith.constant dense<0.000000e+00> : vector<16x128xf32>
    %13 = tpu.matmul %11, %12, %cst_10 {dimension_numbers = #tpu.dot_dimension_numbers<[1], [0], [0], [1], [0, 0, 1, 1], [], []>} : vector<16x128xbf16>, vector<128x128xbf16>, vector<16x128xf32> -> vector<16x128xf32>
    %14 = arith.truncf %13 : vector<16x128xf32> to vector<16x128xbf16>
    %c0_11 = arith.constant 0 : index
    %c0_12 = arith.constant 0 : index
    %15 = vector.load %arg5[%c0_11, %c0_12] : memref<16x128xbf16, #tpu.memory_space<vmem>>, vector<16x128xbf16>
    tpu.vector_store %arg5[%c0_11, %c0_12], %14 {strides = array<i32>} : memref<16x128xbf16, #tpu.memory_space<vmem>>, vector<16x128xbf16>,
    return
  }
  func.func @transform_0(%arg0: i32) -> (i32, i32) {
    %c0_i32 = arith.constant 0 : i32
    %c0_i32_0 = arith.constant 0 : i32
    return %arg0, %c0_i32 : i32, i32
  }
  func.func @transform_1(%arg0: i32) -> (i32, i32) {
    %c0_i32 = arith.constant 0 : i32
    %c0_i32_0 = arith.constant 0 : i32
    %c0_i32_1 = arith.constant 0 : i32
    return %c0_i32, %c0_i32_0 : i32, i32
  }
  func.func @transform_2(%arg0: i32) -> (i32, i32) {
    %c0_i32 = arith.constant 0 : i32
    %c0_i32_0 = arith.constant 0 : i32
    %c0_i32_1 = arith.constant 0 : i32
    return %c0_i32, %c0_i32_0 : i32, i32
  }
  func.func @transform_3(%arg0: i32) -> (i32, i32) {
    %c0_i32 = arith.constant 0 : i32
    %c0_i32_0 = arith.constant 0 : i32
    %c0_i32_1 = arith.constant 0 : i32
    return %c0_i32, %c0_i32_0 : i32, i32
  }
  func.func @transform_4(%arg0: i32) -> (i32, i32) {
    %c0_i32 = arith.constant 0 : i32
    %c0_i32_0 = arith.constant 0 : i32
    return %arg0, %c0_i32 : i32, i32
  }
}

</mosaic_0001>

<llo_original>
// kernel: mlp_forward.1
$region0: #{mlp_forward.1}
  #allocation0 [shape = 'u32[]', space=smem, size = 0x4, offset = 0x4, fixed_abs, tag = 'smem constant byte address 0x4 - core index']
  #allocation1 [shape = 'u32[144,128]{1,0:T(1,128)}', space=vmem, size = 0x12000, scoped, tag = 'internal scratch']
  %s0 = inlined_call_operand.vmem [shape: f32[16,3072], index: 0, kind: input, shape index: {}]
  %s1 = inlined_call_operand.hbm [shape: bf16[3072,128], index: 1, kind: input, shape index: {}]
  %s2 = inlined_call_operand.vmem [shape: bf16[128,128], index: 2, kind: input, shape index: {}]
  %s3 = inlined_call_operand.vmem [shape: bf16[128,128], index: 3, kind: input, shape index: {}]
  %s4 = inlined_call_operand.vmem [shape: bf16[16,128], index: 4, kind: output, shape index: {}]
  %s5 = sld [smem:[#allocation0]]
  $region30: #{mlp_forward.1} parent=0
    _
  %s7 = ssub.s32 1, %s5
  %s8 = scalar_select 0, %s7, %s5
  $region1: #{mlp_forward.1} parent=0
    #allocation2 [shape = 'u8[786432]{0}', space=vmem, size = 0xc0000, scoped, tag = 'input window, operand 1, single buffered']
    #allocation3 [shape = 's32[1]{0}', space=sflag, size = 0x4, scoped, tag = 'scoped memory for mlp_forward.1']
    %9 = vsyncpa [#allocation3], 0
    // Predicated region
    $region2: #{mlp_forward.1} parent=1 // pred_check
      _
    $region3: #{mlp_forward.1} parent=1 // pred_check_branch
      %11 = sbr.rel (0) target = $region5
    $region4: #{mlp_forward.1} parent=1 // pred_region
      _
    $region5: #{mlp_forward.1} parent=1 // pred_fallthru
      _
    // Predicated region
    $region6: #{mlp_forward.1} parent=1 // pred_check
      _
    $region7: #{mlp_forward.1} parent=1 // pred_check_branch
      %13 = sbr.rel (0) target = $region9
    $region8: #{mlp_forward.1} parent=1 // pred_region
      %s15 = ssub.s32 24576, 24576
      %16 = vsyncadd [#allocation3], %s15
      %s17 = sshll.u32 [#allocation2], 4
      %s18 = int_to_ptr.vmem [resolvable:$true] %s17
      %23 = dma.hbm_to_vmem [thread:$0]  %s1, 24576, %s18, [#allocation3], 64, 64, 4
    $region9: #{mlp_forward.1} parent=1 // pred_fallthru
      _
    // Predicated region
    $region10: #{mlp_forward.1} parent=1 // pred_check
      _
    $region11: #{mlp_forward.1} parent=1 // pred_check_branch
      %25 = sbr.rel (0) target = $region13
    $region12: #{mlp_forward.1} parent=1 // pred_region
      _
    $region13: #{mlp_forward.1} parent=1 // pred_fallthru
      _
    // Predicated region
    $region14: #{mlp_forward.1} parent=1 // pred_check
      _
    $region15: #{mlp_forward.1} parent=1 // pred_check_branch
      %27 = sbr.rel (0) target = $region17
    $region16: #{mlp_forward.1} parent=1 // pred_region
      _
    $region17: #{mlp_forward.1} parent=1 // pred_fallthru
      _
    // Predicated region
    $region18: #{mlp_forward.1} parent=1 // pred_check
      _
    $region19: #{mlp_forward.1} parent=1 // pred_check_branch
      %29 = sbr.rel (0) target = $region21
    $region20: #{mlp_forward.1} parent=1 // pred_region
      %30 = dma.done [#allocation3], 24576
    $region21: #{mlp_forward.1} parent=1 // pred_fallthru
      _
    %v32 = vld [vmem:[%s0] sm:$0xff]
    %v33 = vld [vmem:[%s0 + $0x8] sm:$0xff]
    %v34 = vld [vmem:[%s0 + $0x10] sm:$0xff]
    %v35 = vld [vmem:[%s0 + $0x18] sm:$0xff]
    %v36 = vld [vmem:[%s0 + $0x20] sm:$0xff]
    %v37 = vld [vmem:[%s0 + $0x28] sm:$0xff]
    %v38 = vld [vmem:[%s0 + $0x30] sm:$0xff]
    %v39 = vld [vmem:[%s0 + $0x38] sm:$0xff]
    %v40 = vld [vmem:[%s0 + $0x40] sm:$0xff]
    %v41 = vld [vmem:[%s0 + $0x48] sm:$0xff]
    %v42 = vld [vmem:[%s0 + $0x50] sm:$0xff]
    %v43 = vld [vmem:[%s0 + $0x58] sm:$0xff]
    %v44 = vld [vmem:[%s0 + $0x60] sm:$0xff]
    %v45 = vld [vmem:[%s0 + $0x68] sm:$0xff]
    %v46 = vld [vmem:[%s0 + $0x70] sm:$0xff]
    %v47 = vld [vmem:[%s0 + $0x78] sm:$0xff]
    %v48 = vld [vmem:[%s0 + $0x80] sm:$0xff]
    %v49 = vld [vmem:[%s0 + $0x88] sm:$0xff]
    %v50 = vld [vmem:[%s0 + $0x90] sm:$0xff]
    %v51 = vld [vmem:[%s0 + $0x98] sm:$0xff]
    %v52 = vld [vmem:[%s0 + $0xa0] sm:$0xff]
    %v53 = vld [vmem:[%s0 + $0xa8] sm:$0xff]
    %v54 = vld [vmem:[%s0 + $0xb0] sm:$0xff]
    %v55 = vld [vmem:[%s0 + $0xb8] sm:$0xff]
    %v56 = vld [vmem:[%s0 + $0xc0] sm:$0xff]
    %v57 = vld [vmem:[%s0 + $0xc8] sm:$0xff]
    %v58 = vld [vmem:[%s0 + $0xd0] sm:$0xff]
    %v59 = vld [vmem:[%s0 + $0xd8] sm:$0xff]
    %v60 = vld [vmem:[%s0 + $0xe0] sm:$0xff]
    %v61 = vld [vmem:[%s0 + $0xe8] sm:$0xff]
    %v62 = vld [vmem:[%s0 + $0xf0] sm:$0xff]
    %v63 = vld [vmem:[%s0 + $0xf8] sm:$0xff]
    %v64 = vld [vmem:[%s0 + $0x100] sm:$0xff]
    %v65 = vld [vmem:[%s0 + $0x108] sm:$0xff]
    %v66 = vld [vmem:[%s0 + $0x110] sm:$0xff]
    %v67 = vld [vmem:[%s0 + $0x118] sm:$0xff]
    %v68 = vld [vmem:[%s0 + $0x120] sm:$0xff]
    %v69 = vld [vmem:[%s0 + $0x128] sm:$0xff]
    %v70 = vld [vmem:[%s0 + $0x130] sm:$0xff]
    %v71 = vld [vmem:[%s0 + $0x138] sm:$0xff]
    %v72 = vld [vmem:[%s0 + $0x140] sm:$0xff]
    %v73 = vld [vmem:[%s0 + $0x148] sm:$0xff]
    %v74 = vld [vmem:[%s0 + $0x150] sm:$0xff]
    %v75 = vld [vmem:[%s0 + $0x158] sm:$0xff]
    %v76 = vld [vmem:[%s0 + $0x160] sm:$0xff]
    %v77 = vld [vmem:[%s0 + $0x168] sm:$0xff]
    %v78 = vld [vmem:[%s0 + $0x170] sm:$0xff]
    %v79 = vld [vmem:[%s0 + $0x178] sm:$0xff]
    %v80 = vpack.c.bf16 %v56, %v32
    %v81 = vpack.c.bf16 %v57, %v33
    %v82 = vpack.c.bf16 %v58, %v34
    %v83 = vpack.c.bf16 %v59, %v35
    %v84 = vpack.c.bf16 %v60, %v36
    %v85 = vpack.c.bf16 %v61, %v37
    %v86 = vpack.c.bf16 %v62, %v38
    %v87 = vpack.c.bf16 %v63, %v39
    %v88 = vpack.c.bf16 %v64, %v40
    %v89 = vpack.c.bf16 %v65, %v41
    %v90 = vpack.c.bf16 %v66, %v42
    %v91 = vpack.c.bf16 %v67, %v43
    %v92 = vpack.c.bf16 %v68, %v44
    %v93 = vpack.c.bf16 %v69, %v45
    %v94 = vpack.c.bf16 %v70, %v46
    %v95 = vpack.c.bf16 %v71, %v47
    %v96 = vpack.c.bf16 %v72, %v48
    %v97 = vpack.c.bf16 %v73, %v49
    %v98 = vpack.c.bf16 %v74, %v50
    %v99 = vpack.c.bf16 %v75, %v51
    %v100 = vpack.c.bf16 %v76, %v52
    %v101 = vpack.c.bf16 %v77, %v53
    %v102 = vpack.c.bf16 %v78, %v54
    %v103 = vpack.c.bf16 %v79, %v55
    %v104 = vld [vmem:[#allocation2] sm:$0xf]
    %v105 = vld [vmem:[#allocation2 + $0x4] sm:$0xf]
    %v106 = vld [vmem:[#allocation2 + $0x8] sm:$0xf]
    %v107 = vld [vmem:[#allocation2 + $0xc] sm:$0xf]
    %v108 = vld [vmem:[#allocation2 + $0x10] sm:$0xf]
    %v109 = vld [vmem:[#allocation2 + $0x14] sm:$0xf]
    %v110 = vld [vmem:[#allocation2 + $0x18] sm:$0xf]
    %v111 = vld [vmem:[#allocation2 + $0x1c] sm:$0xf]
    %v112 = vld [vmem:[#allocation2 + $0x20] sm:$0xf]
    %v113 = vld [vmem:[#allocation2 + $0x24] sm:$0xf]
    %v114 = vld [vmem:[#allocation2 + $0x28] sm:$0xf]
    %v115 = vld [vmem:[#allocation2 + $0x2c] sm:$0xf]
    %v116 = vld [vmem:[#allocation2 + $0x30] sm:$0xf]
    %v117 = vld [vmem:[#allocation2 + $0x34] sm:$0xf]
    %v118 = vld [vmem:[#allocation2 + $0x38] sm:$0xf]
    %v119 = vld [vmem:[#allocation2 + $0x3c] sm:$0xf]
    %v120 = vld [vmem:[#allocation2 + $0x40] sm:$0xf]
    %v121 = vld [vmem:[#allocation2 + $0x44] sm:$0xf]
    %v122 = vld [vmem:[#allocation2 + $0x48] sm:$0xf]
    %v123 = vld [vmem:[#allocation2 + $0x4c] sm:$0xf]
    %v124 = vld [vmem:[#allocation2 + $0x50] sm:$0xf]
    %v125 = vld [vmem:[#allocation2 + $0x54] sm:$0xf]
    %v126 = vld [vmem:[#allocation2 + $0x58] sm:$0xf]
    %v127 = vld [vmem:[#allocation2 + $0x5c] sm:$0xf]
    %v128 = vld [vmem:[#allocation2 + $0x60] sm:$0xf]
    %v129 = vld [vmem:[#allocation2 + $0x64] sm:$0xf]
    %v130 = vld [vmem:[#allocation2 + $0x68] sm:$0xf]
    %v131 = vld [vmem:[#allocation2 + $0x6c] sm:$0xf]
    %v132 = vld [vmem:[#allocation2 + $0x70] sm:$0xf]
    %v133 = vld [vmem:[#allocation2 + $0x74] sm:$0xf]
    %v134 = vld [vmem:[#allocation2 + $0x78] sm:$0xf]
    %v135 = vld [vmem:[#allocation2 + $0x7c] sm:$0xf]
    %v136 = vld [vmem:[#allocation2 + $0x80] sm:$0xf]
    %v137 = vld [vmem:[#allocation2 + $0x84] sm:$0xf]
    %v138 = vld [vmem:[#allocation2 + $0x88] sm:$0xf]
    %v139 = vld [vmem:[#allocation2 + $0x8c] sm:$0xf]
    %v140 = vld [vmem:[#allocation2 + $0x90] sm:$0xf]
    %v141 = vld [vmem:[#allocation2 + $0x94] sm:$0xf]
    %v142 = vld [vmem:[#allocation2 + $0x98] sm:$0xf]
    %v143 = vld [vmem:[#allocation2 + $0x9c] sm:$0xf]
    %v144 = vld [vmem:[#allocation2 + $0xa0] sm:$0xf]
    %v145 = vld [vmem:[#allocation2 + $0xa4] sm:$0xf]
    %v146 = vld [vmem:[#allocation2 + $0xa8] sm:$0xf]
    %v147 = vld [vmem:[#allocation2 + $0xac] sm:$0xf]
    %v148 = vld [vmem:[#allocation2 + $0xb0] sm:$0xf]
    %v149 = vld [vmem:[#allocation2 + $0xb4] sm:$0xf]
    %v150 = vld [vmem:[#allocation2 + $0xb8] sm:$0xf]
    %v151 = vld [vmem:[#allocation2 + $0xbc] sm:$0xf]
    %v152 = vld [vmem:[#allocation2 + $0xc0] sm:$0xf]
    %v153 = vld [vmem:[#allocation2 + $0xc4] sm:$0xf]
    %v154 = vld [vmem:[#allocation2 + $0xc8] sm:$0xf]
    %v155 = vld [vmem:[#allocation2 + $0xcc] sm:$0xf]
    %v156 = vld [vmem:[#allocation2 + $0xd0] sm:$0xf]
    %v157 = vld [vmem:[#allocation2 + $0xd4] sm:$0xf]
    %v158 = vld [vmem:[#allocation2 + $0xd8] sm:$0xf]
    %v159 = vld [vmem:[#allocation2 + $0xdc] sm:$0xf]
    %v160 = vld [vmem:[#allocation2 + $0xe0] sm:$0xf]
    %v161 = vld [vmem:[#allocation2 + $0xe4] sm:$0xf]
    %v162 = vld [vmem:[#allocation2 + $0xe8] sm:$0xf]
    %v163 = vld [vmem:[#allocation2 + $0xec] sm:$0xf]
    %v164 = vld [vmem:[#allocation2 + $0xf0] sm:$0xf]
    %v165 = vld [vmem:[#allocation2 + $0xf4] sm:$0xf]
    %v166 = vld [vmem:[#allocation2 + $0xf8] sm:$0xf]
    %v167 = vld [vmem:[#allocation2 + $0xfc] sm:$0xf]
    %v168 = vld [vmem:[#allocation2 + $0x100] sm:$0xf]
    %v169 = vld [vmem:[#allocation2 + $0x104] sm:$0xf]
    %v170 = vld [vmem:[#allocation2 + $0x108] sm:$0xf]
    %v171 = vld [vmem:[#allocation2 + $0x10c] sm:$0xf]
    %v172 = vld [vmem:[#allocation2 + $0x110] sm:$0xf]
    %v173 = vld [vmem:[#allocation2 + $0x114] sm:$0xf]
    %v174 = vld [vmem:[#allocation2 + $0x118] sm:$0xf]
    %v175 = vld [vmem:[#allocation2 + $0x11c] sm:$0xf]
    %v176 = vld [vmem:[#allocation2 + $0x120] sm:$0xf]
    %v177 = vld [vmem:[#allocation2 + $0x124] sm:$0xf]
    %v178 = vld [vmem:[#allocation2 + $0x128] sm:$0xf]
    %v179 = vld [vmem:[#allocation2 + $0x12c] sm:$0xf]
    %v180 = vld [vmem:[#allocation2 + $0x130] sm:$0xf]
    %v181 = vld [vmem:[#allocation2 + $0x134] sm:$0xf]
    %v182 = vld [vmem:[#allocation2 + $0x138] sm:$0xf]
    %v183 = vld [vmem:[#allocation2 + $0x13c] sm:$0xf]
    %v184 = vld [vmem:[#allocation2 + $0x140] sm:$0xf]
    %v185 = vld [vmem:[#allocation2 + $0x144] sm:$0xf]
    %v186 = vld [vmem:[#allocation2 + $0x148] sm:$0xf]
    %v187 = vld [vmem:[#allocation2 + $0x14c] sm:$0xf]
    %v188 = vld [vmem:[#allocation2 + $0x150] sm:$0xf]
    %v189 = vld [vmem:[#allocation2 + $0x154] sm:$0xf]
    %v190 = vld [vmem:[#allocation2 + $0x158] sm:$0xf]
    %v191 = vld [vmem:[#allocation2 + $0x15c] sm:$0xf]
    %v192 = vld [vmem:[#allocation2 + $0x160] sm:$0xf]
    %v193 = vld [vmem:[#allocation2 + $0x164] sm:$0xf]
    %v194 = vld [vmem:[#allocation2 + $0x168] sm:$0xf]
    %v195 = vld [vmem:[#allocation2 + $0x16c] sm:$0xf]
    %v196 = vld [vmem:[#allocation2 + $0x170] sm:$0xf]
    %v197 = vld [vmem:[#allocation2 + $0x174] sm:$0xf]
    %v198 = vld [vmem:[#allocation2 + $0x178] sm:$0xf]
    %v199 = vld [vmem:[#allocation2 + $0x17c] sm:$0xf]
    %v200 = vld [vmem:[#allocation2 + $0x180] sm:$0xf]
    %v201 = vld [vmem:[#allocation2 + $0x184] sm:$0xf]
    %v202 = vld [vmem:[#allocation2 + $0x188] sm:$0xf]
    %v203 = vld [vmem:[#allocation2 + $0x18c] sm:$0xf]
    %v204 = vld [vmem:[#allocation2 + $0x190] sm:$0xf]
    %v205 = vld [vmem:[#allocation2 + $0x194] sm:$0xf]
    %v206 = vld [vmem:[#allocation2 + $0x198] sm:$0xf]
    %v207 = vld [vmem:[#allocation2 + $0x19c] sm:$0xf]
    %v208 = vld [vmem:[#allocation2 + $0x1a0] sm:$0xf]
    %v209 = vld [vmem:[#allocation2 + $0x1a4] sm:$0xf]
    %v210 = vld [vmem:[#allocation2 + $0x1a8] sm:$0xf]
    %v211 = vld [vmem:[#allocation2 + $0x1ac] sm:$0xf]
    %v212 = vld [vmem:[#allocation2 + $0x1b0] sm:$0xf]
    %v213 = vld [vmem:[#allocation2 + $0x1b4] sm:$0xf]
    %v214 = vld [vmem:[#allocation2 + $0x1b8] sm:$0xf]
    %v215 = vld [vmem:[#allocation2 + $0x1bc] sm:$0xf]
    %v216 = vld [vmem:[#allocation2 + $0x1c0] sm:$0xf]
    %v217 = vld [vmem:[#allocation2 + $0x1c4] sm:$0xf]
    %v218 = vld [vmem:[#allocation2 + $0x1c8] sm:$0xf]
    %v219 = vld [vmem:[#allocation2 + $0x1cc] sm:$0xf]
    %v220 = vld [vmem:[#allocation2 + $0x1d0] sm:$0xf]
    %v221 = vld [vmem:[#allocation2 + $0x1d4] sm:$0xf]
    %v222 = vld [vmem:[#allocation2 + $0x1d8] sm:$0xf]
    %v223 = vld [vmem:[#allocation2 + $0x1dc] sm:$0xf]
    %v224 = vld [vmem:[#allocation2 + $0x1e0] sm:$0xf]
    %v225 = vld [vmem:[#allocation2 + $0x1e4] sm:$0xf]
    %v226 = vld [vmem:[#allocation2 + $0x1e8] sm:$0xf]
    %v227 = vld [vmem:[#allocation2 + $0x1ec] sm:$0xf]
    %v228 = vld [vmem:[#allocation2 + $0x1f0] sm:$0xf]
    %v229 = vld [vmem:[#allocation2 + $0x1f4] sm:$0xf]
    %v230 = vld [vmem:[#allocation2 + $0x1f8] sm:$0xf]
    %v231 = vld [vmem:[#allocation2 + $0x1fc] sm:$0xf]
    %v232 = vld [vmem:[#allocation2 + $0x200] sm:$0xf]
    %v233 = vld [vmem:[#allocation2 + $0x204] sm:$0xf]
    %v234 = vld [vmem:[#allocation2 + $0x208] sm:$0xf]
    %v235 = vld [vmem:[#allocation2 + $0x20c] sm:$0xf]
    %v236 = vld [vmem:[#allocation2 + $0x210] sm:$0xf]
    %v237 = vld [vmem:[#allocation2 + $0x214] sm:$0xf]
    %v238 = vld [vmem:[#allocation2 + $0x218] sm:$0xf]
    %v239 = vld [vmem:[#allocation2 + $0x21c] sm:$0xf]
    %v240 = vld [vmem:[#allocation2 + $0x220] sm:$0xf]
    %v241 = vld [vmem:[#allocation2 + $0x224] sm:$0xf]
    %v242 = vld [vmem:[#allocation2 + $0x228] sm:$0xf]
    %v243 = vld [vmem:[#allocation2 + $0x22c] sm:$0xf]
    %v244 = vld [vmem:[#allocation2 + $0x230] sm:$0xf]
    %v245 = vld [vmem:[#allocation2 + $0x234] sm:$0xf]
    %v246 = vld [vmem:[#allocation2 + $0x238] sm:$0xf]
    %v247 = vld [vmem:[#allocation2 + $0x23c] sm:$0xf]
    %v248 = vld [vmem:[#allocation2 + $0x240] sm:$0xf]
    %v249 = vld [vmem:[#allocation2 + $0x244] sm:$0xf]
    %v250 = vld [vmem:[#allocation2 + $0x248] sm:$0xf]
    %v251 = vld [vmem:[#allocation2 + $0x24c] sm:$0xf]
    %v252 = vld [vmem:[#allocation2 + $0x250] sm:$0xf]
    %v253 = vld [vmem:[#allocation2 + $0x254] sm:$0xf]
    %v254 = vld [vmem:[#allocation2 + $0x258] sm:$0xf]
    %v255 = vld [vmem:[#allocation2 + $0x25c] sm:$0xf]
    %v256 = vld [vmem:[#allocation2 + $0x260] sm:$0xf]
    %v257 = vld [vmem:[#allocation2 + $0x264] sm:$0xf]
    %v258 = vld [vmem:[#allocation2 + $0x268] sm:$0xf]
    %v259 = vld [vmem:[#allocation2 + $0x26c] sm:$0xf]
    %v260 = vld [vmem:[#allocation2 + $0x270] sm:$0xf]
    %v261 = vld [vmem:[#allocation2 + $0x274] sm:$0xf]
    %v262 = vld [vmem:[#allocation2 + $0x278] sm:$0xf]
    %v263 = vld [vmem:[#allocation2 + $0x27c] sm:$0xf]
    %v264 = vld [vmem:[#allocation2 + $0x280] sm:$0xf]
    %v265 = vld [vmem:[#allocation2 + $0x284] sm:$0xf]
    %v266 = vld [vmem:[#allocation2 + $0x288] sm:$0xf]
    %v267 = vld [vmem:[#allocation2 + $0x28c] sm:$0xf]
    %v268 = vld [vmem:[#allocation2 + $0x290] sm:$0xf]
    %v269 = vld [vmem:[#allocation2 + $0x294] sm:$0xf]
    %v270 = vld [vmem:[#allocation2 + $0x298] sm:$0xf]
    %v271 = vld [vmem:[#allocation2 + $0x29c] sm:$0xf]
    %v272 = vld [vmem:[#allocation2 + $0x2a0] sm:$0xf]
    %v273 = vld [vmem:[#allocation2 + $0x2a4] sm:$0xf]
    %v274 = vld [vmem:[#allocation2 + $0x2a8] sm:$0xf]
    %v275 = vld [vmem:[#allocation2 + $0x2ac] sm:$0xf]
    %v276 = vld [vmem:[#allocation2 + $0x2b0] sm:$0xf]
    %v277 = vld [vmem:[#allocation2 + $0x2b4] sm:$0xf]
    %v278 = vld [vmem:[#allocation2 + $0x2b8] sm:$0xf]
    %v279 = vld [vmem:[#allocation2 + $0x2bc] sm:$0xf]
    %v280 = vld [vmem:[#allocation2 + $0x2c0] sm:$0xf]
    %v281 = vld [vmem:[#allocation2 + $0x2c4] sm:$0xf]
    %v282 = vld [vmem:[#allocation2 + $0x2c8] sm:$0xf]
    %v283 = vld [vmem:[#allocation2 + $0x2cc] sm:$0xf]
    %v284 = vld [vmem:[#allocation2 + $0x2d0] sm:$0xf]
    %v285 = vld [vmem:[#allocation2 + $0x2d4] sm:$0xf]
    %v286 = vld [vmem:[#allocation2 + $0x2d8] sm:$0xf]
    %v287 = vld [vmem:[#allocation2 + $0x2dc] sm:$0xf]
    %v288 = vld [vmem:[#allocation2 + $0x2e0] sm:$0xf]
    %v289 = vld [vmem:[#allocation2 + $0x2e4] sm:$0xf]
    %v290 = vld [vmem:[#allocation2 + $0x2e8] sm:$0xf]
    %v291 = vld [vmem:[#allocation2 + $0x2ec] sm:$0xf]
    %v292 = vld [vmem:[#allocation2 + $0x2f0] sm:$0xf]
    %v293 = vld [vmem:[#allocation2 + $0x2f4] sm:$0xf]
    %v294 = vld [vmem:[#allocation2 + $0x2f8] sm:$0xf]
    %v295 = vld [vmem:[#allocation2 + $0x2fc] sm:$0xf]
    %v296 = vld [vmem:[#allocation2 + $0x300] sm:$0xf]
    %v297 = vld [vmem:[#allocation2 + $0x304] sm:$0xf]
    %v298 = vld [vmem:[#allocation2 + $0x308] sm:$0xf]
    %v299 = vld [vmem:[#allocation2 + $0x30c] sm:$0xf]
    %v300 = vld [vmem:[#allocation2 + $0x310] sm:$0xf]
    %v301 = vld [vmem:[#allocation2 + $0x314] sm:$0xf]
    %v302 = vld [vmem:[#allocation2 + $0x318] sm:$0xf]
    %v303 = vld [vmem:[#allocation2 + $0x31c] sm:$0xf]
    %v304 = vld [vmem:[#allocation2 + $0x320] sm:$0xf]
    %v305 = vld [vmem:[#allocation2 + $0x324] sm:$0xf]
    %v306 = vld [vmem:[#allocation2 + $0x328] sm:$0xf]
    %v307 = vld [vmem:[#allocation2 + $0x32c] sm:$0xf]
    %v308 = vld [vmem:[#allocation2 + $0x330] sm:$0xf]
    %v309 = vld [vmem:[#allocation2 + $0x334] sm:$0xf]
    %v310 = vld [vmem:[#allocation2 + $0x338] sm:$0xf]
    %v311 = vld [vmem:[#allocation2 + $0x33c] sm:$0xf]
    %v312 = vld [vmem:[#allocation2 + $0x340] sm:$0xf]
    %v313 = vld [vmem:[#allocation2 + $0x344] sm:$0xf]
    %v314 = vld [vmem:[#allocation2 + $0x348] sm:$0xf]
    %v315 = vld [vmem:[#allocation2 + $0x34c] sm:$0xf]
    %v316 = vld [vmem:[#allocation2 + $0x350] sm:$0xf]
    %v317 = vld [vmem:[#allocation2 + $0x354] sm:$0xf]
    %v318 = vld [vmem:[#allocation2 + $0x358] sm:$0xf]
    %v319 = vld [vmem:[#allocation2 + $0x35c] sm:$0xf]
    %v320 = vld [vmem:[#allocation2 + $0x360] sm:$0xf]
    %v321 = vld [vmem:[#allocation2 + $0x364] sm:$0xf]
    %v322 = vld [vmem:[#allocation2 + $0x368] sm:$0xf]
    %v323 = vld [vmem:[#allocation2 + $0x36c] sm:$0xf]
    %v324 = vld [vmem:[#allocation2 + $0x370] sm:$0xf]
    %v325 = vld [vmem:[#allocation2 + $0x374] sm:$0xf]
    %v326 = vld [vmem:[#allocation2 + $0x378] sm:$0xf]
    %v327 = vld [vmem:[#allocation2 + $0x37c] sm:$0xf]
    %v328 = vld [vmem:[#allocation2 + $0x380] sm:$0xf]
    %v329 = vld [vmem:[#allocation2 + $0x384] sm:$0xf]
    %v330 = vld [vmem:[#allocation2 + $0x388] sm:$0xf]
    %v331 = vld [vmem:[#allocation2 + $0x38c] sm:$0xf]
    %v332 = vld [vmem:[#allocation2 + $0x390] sm:$0xf]
    %v333 = vld [vmem:[#allocation2 + $0x394] sm:$0xf]
    %v334 = vld [vmem:[#allocation2 + $0x398] sm:$0xf]
    %v335 = vld [vmem:[#allocation2 + $0x39c] sm:$0xf]
    %v336 = vld [vmem:[#allocation2 + $0x3a0] sm:$0xf]
    %v337 = vld [vmem:[#allocation2 + $0x3a4] sm:$0xf]
    %v338 = vld [vmem:[#allocation2 + $0x3a8] sm:$0xf]
    %v339 = vld [vmem:[#allocation2 + $0x3ac] sm:$0xf]
    %v340 = vld [vmem:[#allocation2 + $0x3b0] sm:$0xf]
    %v341 = vld [vmem:[#allocation2 + $0x3b4] sm:$0xf]
    %v342 = vld [vmem:[#allocation2 + $0x3b8] sm:$0xf]
    %v343 = vld [vmem:[#allocation2 + $0x3bc] sm:$0xf]
    %v344 = vld [vmem:[#allocation2 + $0x3c0] sm:$0xf]
    %v345 = vld [vmem:[#allocation2 + $0x3c4] sm:$0xf]
    %v346 = vld [vmem:[#allocation2 + $0x3c8] sm:$0xf]
    %v347 = vld [vmem:[#allocation2 + $0x3cc] sm:$0xf]
    %v348 = vld [vmem:[#allocation2 + $0x3d0] sm:$0xf]
    %v349 = vld [vmem:[#allocation2 + $0x3d4] sm:$0xf]
    %v350 = vld [vmem:[#allocation2 + $0x3d8] sm:$0xf]
    %v351 = vld [vmem:[#allocation2 + $0x3dc] sm:$0xf]
    %v352 = vld [vmem:[#allocation2 + $0x3e0] sm:$0xf]
    %v353 = vld [vmem:[#allocation2 + $0x3e4] sm:$0xf]
    %v354 = vld [vmem:[#allocation2 + $0x3e8] sm:$0xf]
    %v355 = vld [vmem:[#allocation2 + $0x3ec] sm:$0xf]
    %v356 = vld [vmem:[#allocation2 + $0x3f0] sm:$0xf]
    %v357 = vld [vmem:[#allocation2 + $0x3f4] sm:$0xf]
    %v358 = vld [vmem:[#allocation2 + $0x3f8] sm:$0xf]
    %v359 = vld [vmem:[#allocation2 + $0x3fc] sm:$0xf]
    %v360 = vld [vmem:[#allocation2 + $0x400] sm:$0xf]
    %v361 = vld [vmem:[#allocation2 + $0x404] sm:$0xf]
    %v362 = vld [vmem:[#allocation2 + $0x408] sm:$0xf]
    %v363 = vld [vmem:[#allocation2 + $0x40c] sm:$0xf]
    %v364 = vld [vmem:[#allocation2 + $0x410] sm:$0xf]
    %v365 = vld [vmem:[#allocation2 + $0x414] sm:$0xf]
    %v366 = vld [vmem:[#allocation2 + $0x418] sm:$0xf]
    %v367 = vld [vmem:[#allocation2 + $0x41c] sm:$0xf]
    %v368 = vld [vmem:[#allocation2 + $0x420] sm:$0xf]
    %v369 = vld [vmem:[#allocation2 + $0x424] sm:$0xf]
    %v370 = vld [vmem:[#allocation2 + $0x428] sm:$0xf]
    %v371 = vld [vmem:[#allocation2 + $0x42c] sm:$0xf]
    %v372 = vld [vmem:[#allocation2 + $0x430] sm:$0xf]
    %v373 = vld [vmem:[#allocation2 + $0x434] sm:$0xf]
    %v374 = vld [vmem:[#allocation2 + $0x438] sm:$0xf]
    %v375 = vld [vmem:[#allocation2 + $0x43c] sm:$0xf]
    %v376 = vld [vmem:[#allocation2 + $0x440] sm:$0xf]
    %v377 = vld [vmem:[#allocation2 + $0x444] sm:$0xf]
    %v378 = vld [vmem:[#allocation2 + $0x448] sm:$0xf]
    %v379 = vld [vmem:[#allocation2 + $0x44c] sm:$0xf]
    %v380 = vld [vmem:[#allocation2 + $0x450] sm:$0xf]
    %v381 = vld [vmem:[#allocation2 + $0x454] sm:$0xf]
    %v382 = vld [vmem:[#allocation2 + $0x458] sm:$0xf]
    %v383 = vld [vmem:[#allocation2 + $0x45c] sm:$0xf]
    %v384 = vld [vmem:[#allocation2 + $0x460] sm:$0xf]
    %v385 = vld [vmem:[#allocation2 + $0x464] sm:$0xf]
    %v386 = vld [vmem:[#allocation2 + $0x468] sm:$0xf]
    %v387 = vld [vmem:[#allocation2 + $0x46c] sm:$0xf]
    %v388 = vld [vmem:[#allocation2 + $0x470] sm:$0xf]
    %v389 = vld [vmem:[#allocation2 + $0x474] sm:$0xf]
    %v390 = vld [vmem:[#allocation2 + $0x478] sm:$0xf]
    %v391 = vld [vmem:[#allocation2 + $0x47c] sm:$0xf]
    %v392 = vld [vmem:[#allocation2 + $0x480] sm:$0xf]
    %v393 = vld [vmem:[#allocation2 + $0x484] sm:$0xf]
    %v394 = vld [vmem:[#allocation2 + $0x488] sm:$0xf]
    %v395 = vld [vmem:[#allocation2 + $0x48c] sm:$0xf]
    %v396 = vld [vmem:[#allocation2 + $0x490] sm:$0xf]
    %v397 = vld [vmem:[#allocation2 + $0x494] sm:$0xf]
    %v398 = vld [vmem:[#allocation2 + $0x498] sm:$0xf]
    %v399 = vld [vmem:[#allocation2 + $0x49c] sm:$0xf]
    %v400 = vld [vmem:[#allocation2 + $0x4a0] sm:$0xf]
    %v401 = vld [vmem:[#allocation2 + $0x4a4] sm:$0xf]
    %v402 = vld [vmem:[#allocation2 + $0x4a8] sm:$0xf]
    %v403 = vld [vmem:[#allocation2 + $0x4ac] sm:$0xf]
    %v404 = vld [vmem:[#allocation2 + $0x4b0] sm:$0xf]
    %v405 = vld [vmem:[#allocation2 + $0x4b4] sm:$0xf]
    %v406 = vld [vmem:[#allocation2 + $0x4b8] sm:$0xf]
    %v407 = vld [vmem:[#allocation2 + $0x4bc] sm:$0xf]
    %v408 = vld [vmem:[#allocation2 + $0x4c0] sm:$0xf]
    %v409 = vld [vmem:[#allocation2 + $0x4c4] sm:$0xf]
    %v410 = vld [vmem:[#allocation2 + $0x4c8] sm:$0xf]
    %v411 = vld [vmem:[#allocation2 + $0x4cc] sm:$0xf]
    %v412 = vld [vmem:[#allocation2 + $0x4d0] sm:$0xf]
    %v413 = vld [vmem:[#allocation2 + $0x4d4] sm:$0xf]
    %v414 = vld [vmem:[#allocation2 + $0x4d8] sm:$0xf]
    %v415 = vld [vmem:[#allocation2 + $0x4dc] sm:$0xf]
    %v416 = vld [vmem:[#allocation2 + $0x4e0] sm:$0xf]
    %v417 = vld [vmem:[#allocation2 + $0x4e4] sm:$0xf]
    %v418 = vld [vmem:[#allocation2 + $0x4e8] sm:$0xf]
    %v419 = vld [vmem:[#allocation2 + $0x4ec] sm:$0xf]
    %v420 = vld [vmem:[#allocation2 + $0x4f0] sm:$0xf]
    %v421 = vld [vmem:[#allocation2 + $0x4f4] sm:$0xf]
    %v422 = vld [vmem:[#allocation2 + $0x4f8] sm:$0xf]
    %v423 = vld [vmem:[#allocation2 + $0x4fc] sm:$0xf]
    %v424 = vld [vmem:[#allocation2 + $0x500] sm:$0xf]
    %v425 = vld [vmem:[#allocation2 + $0x504] sm:$0xf]
    %v426 = vld [vmem:[#allocation2 + $0x508] sm:$0xf]
    %v427 = vld [vmem:[#allocation2 + $0x50c] sm:$0xf]
    %v428 = vld [vmem:[#allocation2 + $0x510] sm:$0xf]
    %v429 = vld [vmem:[#allocation2 + $0x514] sm:$0xf]
    %v430 = vld [vmem:[#allocation2 + $0x518] sm:$0xf]
    %v431 = vld [vmem:[#allocation2 + $0x51c] sm:$0xf]
    %v432 = vld [vmem:[#allocation2 + $0x520] sm:$0xf]
    %v433 = vld [vmem:[#allocation2 + $0x524] sm:$0xf]
    %v434 = vld [vmem:[#allocation2 + $0x528] sm:$0xf]
    %v435 = vld [vmem:[#allocation2 + $0x52c] sm:$0xf]
    %v436 = vld [vmem:[#allocation2 + $0x530] sm:$0xf]
    %v437 = vld [vmem:[#allocation2 + $0x534] sm:$0xf]
    %v438 = vld [vmem:[#allocation2 + $0x538] sm:$0xf]
    %v439 = vld [vmem:[#allocation2 + $0x53c] sm:$0xf]
    %v440 = vld [vmem:[#allocation2 + $0x540] sm:$0xf]
    %v441 = vld [vmem:[#allocation2 + $0x544] sm:$0xf]
    %v442 = vld [vmem:[#allocation2 + $0x548] sm:$0xf]
    %v443 = vld [vmem:[#allocation2 + $0x54c] sm:$0xf]
    %v444 = vld [vmem:[#allocation2 + $0x550] sm:$0xf]
    %v445 = vld [vmem:[#allocation2 + $0x554] sm:$0xf]
    %v446 = vld [vmem:[#allocation2 + $0x558] sm:$0xf]
    %v447 = vld [vmem:[#allocation2 + $0x55c] sm:$0xf]
    %v448 = vld [vmem:[#allocation2 + $0x560] sm:$0xf]
    %v449 = vld [vmem:[#allocation2 + $0x564] sm:$0xf]
    %v450 = vld [vmem:[#allocation2 + $0x568] sm:$0xf]
    %v451 = vld [vmem:[#allocation2 + $0x56c] sm:$0xf]
    %v452 = vld [vmem:[#allocation2 + $0x570] sm:$0xf]
    %v453 = vld [vmem:[#allocation2 + $0x574] sm:$0xf]
    %v454 = vld [vmem:[#allocation2 + $0x578] sm:$0xf]
    %v455 = vld [vmem:[#allocation2 + $0x57c] sm:$0xf]
    %v456 = vld [vmem:[#allocation2 + $0x580] sm:$0xf]
    %v457 = vld [vmem:[#allocation2 + $0x584] sm:$0xf]
    %v458 = vld [vmem:[#allocation2 + $0x588] sm:$0xf]
    %v459 = vld [vmem:[#allocation2 + $0x58c] sm:$0xf]
    %v460 = vld [vmem:[#allocation2 + $0x590] sm:$0xf]
    %v461 = vld [vmem:[#allocation2 + $0x594] sm:$0xf]
    %v462 = vld [vmem:[#allocation2 + $0x598] sm:$0xf]
    %v463 = vld [vmem:[#allocation2 + $0x59c] sm:$0xf]
    %v464 = vld [vmem:[#allocation2 + $0x5a0] sm:$0xf]
    %v465 = vld [vmem:[#allocation2 + $0x5a4] sm:$0xf]
    %v466 = vld [vmem:[#allocation2 + $0x5a8] sm:$0xf]
    %v467 = vld [vmem:[#allocation2 + $0x5ac] sm:$0xf]
    %v468 = vld [vmem:[#allocation2 + $0x5b0] sm:$0xf]
    %v469 = vld [vmem:[#allocation2 + $0x5b4] sm:$0xf]
    %v470 = vld [vmem:[#allocation2 + $0x5b8] sm:$0xf]
    %v471 = vld [vmem:[#allocation2 + $0x5bc] sm:$0xf]
    %v472 = vld [vmem:[#allocation2 + $0x5c0] sm:$0xf]
    %v473 = vld [vmem:[#allocation2 + $0x5c4] sm:$0xf]
    %v474 = vld [vmem:[#allocation2 + $0x5c8] sm:$0xf]
    %v475 = vld [vmem:[#allocation2 + $0x5cc] sm:$0xf]
    %v476 = vld [vmem:[#allocation2 + $0x5d0] sm:$0xf]
    %v477 = vld [vmem:[#allocation2 + $0x5d4] sm:$0xf]
    %v478 = vld [vmem:[#allocation2 + $0x5d8] sm:$0xf]
    %v479 = vld [vmem:[#allocation2 + $0x5dc] sm:$0xf]
    %v480 = vld [vmem:[#allocation2 + $0x5e0] sm:$0xf]
    %v481 = vld [vmem:[#allocation2 + $0x5e4] sm:$0xf]
    %v482 = vld [vmem:[#allocation2 + $0x5e8] sm:$0xf]
    %v483 = vld [vmem:[#allocation2 + $0x5ec] sm:$0xf]
    %v484 = vld [vmem:[#allocation2 + $0x5f0] sm:$0xf]
    %v485 = vld [vmem:[#allocation2 + $0x5f4] sm:$0xf]
    %v486 = vld [vmem:[#allocation2 + $0x5f8] sm:$0xf]
    %v487 = vld [vmem:[#allocation2 + $0x5fc] sm:$0xf]
    %v872 = vunpack.c.l.b16 %v104
    %v873 = vunpack.c.l.b16 %v105
    %v874 = vunpack.c.l.b16 %v106
    %v875 = vunpack.c.l.b16 %v107
    %v876 = vunpack.c.l.b16 %v108
    %v877 = vunpack.c.l.b16 %v109
    %v878 = vunpack.c.l.b16 %v110
    %v879 = vunpack.c.l.b16 %v111
    %v880 = vunpack.c.l.b16 %v112
    %v881 = vunpack.c.l.b16 %v113
    %v882 = vunpack.c.l.b16 %v114
    %v883 = vunpack.c.l.b16 %v115
    %v884 = vunpack.c.l.b16 %v116
    %v885 = vunpack.c.l.b16 %v117
    %v886 = vunpack.c.l.b16 %v118
    %v887 = vunpack.c.l.b16 %v119
    %v888 = vunpack.c.l.b16 %v120
    %v889 = vunpack.c.l.b16 %v121
    %v890 = vunpack.c.l.b16 %v122
    %v891 = vunpack.c.l.b16 %v123
    %v892 = vunpack.c.l.b16 %v124
    %v893 = vunpack.c.l.b16 %v125
    %v894 = vunpack.c.l.b16 %v126
    %v895 = vunpack.c.l.b16 %v127
    %v896 = vunpack.c.l.b16 %v128
    %v897 = vunpack.c.l.b16 %v129
    %v898 = vunpack.c.l.b16 %v130
    %v899 = vunpack.c.l.b16 %v131
    %v900 = vunpack.c.l.b16 %v132
    %v901 = vunpack.c.l.b16 %v133
    %v902 = vunpack.c.l.b16 %v134
    %v903 = vunpack.c.l.b16 %v135
    %v904 = vunpack.c.l.b16 %v136
    %v905 = vunpack.c.l.b16 %v137
    %v906 = vunpack.c.l.b16 %v138
    %v907 = vunpack.c.l.b16 %v139
    %v908 = vunpack.c.l.b16 %v140
    %v909 = vunpack.c.l.b16 %v141
    %v910 = vunpack.c.l.b16 %v142
    %v911 = vunpack.c.l.b16 %v143
    %v912 = vunpack.c.l.b16 %v144
    %v913 = vunpack.c.l.b16 %v145
    %v914 = vunpack.c.l.b16 %v146
    %v915 = vunpack.c.l.b16 %v147
    %v916 = vunpack.c.l.b16 %v148
    %v917 = vunpack.c.l.b16 %v149
    %v918 = vunpack.c.l.b16 %v150
    %v919 = vunpack.c.l.b16 %v151
    %v920 = vunpack.c.l.b16 %v152
    %v921 = vunpack.c.l.b16 %v153
    %v922 = vunpack.c.l.b16 %v154
    %v923 = vunpack.c.l.b16 %v155
    %v924 = vunpack.c.l.b16 %v156
    %v925 = vunpack.c.l.b16 %v157
    %v926 = vunpack.c.l.b16 %v158
    %v927 = vunpack.c.l.b16 %v159
    %v928 = vunpack.c.l.b16 %v160
    %v929 = vunpack.c.l.b16 %v161
    %v930 = vunpack.c.l.b16 %v162
    %v931 = vunpack.c.l.b16 %v163
    %v932 = vunpack.c.l.b16 %v164
    %v933 = vunpack.c.l.b16 %v165
    %v934 = vunpack.c.l.b16 %v166
    %v935 = vunpack.c.l.b16 %v167
    %v936 = vunpack.c.l.b16 %v168
    %v937 = vunpack.c.l.b16 %v169
    %v938 = vunpack.c.l.b16 %v170
    %v939 = vunpack.c.l.b16 %v171
    %v940 = vunpack.c.l.b16 %v172
    %v941 = vunpack.c.l.b16 %v173
    %v942 = vunpack.c.l.b16 %v174
    %v943 = vunpack.c.l.b16 %v175
    %v944 = vunpack.c.l.b16 %v176
    %v945 = vunpack.c.l.b16 %v177
    %v946 = vunpack.c.l.b16 %v178
    %v947 = vunpack.c.l.b16 %v179
    %v948 = vunpack.c.l.b16 %v180
    %v949 = vunpack.c.l.b16 %v181
    %v950 = vunpack.c.l.b16 %v182
    %v951 = vunpack.c.l.b16 %v183
    %v952 = vunpack.c.l.b16 %v184
    %v953 = vunpack.c.l.b16 %v185
    %v954 = vunpack.c.l.b16 %v186
    %v955 = vunpack.c.l.b16 %v187
    %v956 = vunpack.c.l.b16 %v188
    %v957 = vunpack.c.l.b16 %v189
    %v958 = vunpack.c.l.b16 %v190
    %v959 = vunpack.c.l.b16 %v191
    %v960 = vunpack.c.l.b16 %v192
    %v961 = vunpack.c.l.b16 %v193
    %v962 = vunpack.c.l.b16 %v194
    %v963 = vunpack.c.l.b16 %v195
    %v964 = vunpack.c.l.b16 %v196
    %v965 = vunpack.c.l.b16 %v197
    %v966 = vunpack.c.l.b16 %v198
    %v967 = vunpack.c.l.b16 %v199
    %v968 = vunpack.c.l.b16 %v200
    %v969 = vunpack.c.l.b16 %v201
    %v970 = vunpack.c.l.b16 %v202
    %v971 = vunpack.c.l.b16 %v203
    %v972 = vunpack.c.l.b16 %v204
    %v973 = vunpack.c.l.b16 %v205
    %v974 = vunpack.c.l.b16 %v206
    %v975 = vunpack.c.l.b16 %v207
    %v976 = vunpack.c.l.b16 %v208
    %v977 = vunpack.c.l.b16 %v209
    %v978 = vunpack.c.l.b16 %v210
    %v979 = vunpack.c.l.b16 %v211
    %v980 = vunpack.c.l.b16 %v212
    %v981 = vunpack.c.l.b16 %v213
    %v982 = vunpack.c.l.b16 %v214
    %v983 = vunpack.c.l.b16 %v215
    %v984 = vunpack.c.l.b16 %v216
    %v985 = vunpack.c.l.b16 %v217
    %v986 = vunpack.c.l.b16 %v218
    %v987 = vunpack.c.l.b16 %v219
    %v988 = vunpack.c.l.b16 %v220
    %v989 = vunpack.c.l.b16 %v221
    %v990 = vunpack.c.l.b16 %v222
    %v991 = vunpack.c.l.b16 %v223
    %v992 = vunpack.c.l.b16 %v224
    %v993 = vunpack.c.l.b16 %v225
    %v994 = vunpack.c.l.b16 %v226
    %v995 = vunpack.c.l.b16 %v227
    %v996 = vunpack.c.l.b16 %v228
    %v997 = vunpack.c.l.b16 %v229
    %v998 = vunpack.c.l.b16 %v230
    %v999 = vunpack.c.l.b16 %v231
    %v1000 = vunpack.c.l.b16 %v232
    %v1001 = vunpack.c.l.b16 %v233
    %v1002 = vunpack.c.l.b16 %v234
    %v1003 = vunpack.c.l.b16 %v235
    %v1004 = vunpack.c.l.b16 %v236
    %v1005 = vunpack.c.l.b16 %v237
    %v1006 = vunpack.c.l.b16 %v238
    %v1007 = vunpack.c.l.b16 %v239
    %v1008 = vunpack.c.l.b16 %v240
    %v1009 = vunpack.c.l.b16 %v241
    %v1010 = vunpack.c.l.b16 %v242
    %v1011 = vunpack.c.l.b16 %v243
    %v1012 = vunpack.c.l.b16 %v244
    %v1013 = vunpack.c.l.b16 %v245
    %v1014 = vunpack.c.l.b16 %v246
    %v1015 = vunpack.c.l.b16 %v247
    %v1016 = vunpack.c.l.b16 %v248
    %v1017 = vunpack.c.l.b16 %v249
    %v1018 = vunpack.c.l.b16 %v250
    %v1019 = vunpack.c.l.b16 %v251
    %v1020 = vunpack.c.l.b16 %v252
    %v1021 = vunpack.c.l.b16 %v253
    %v1022 = vunpack.c.l.b16 %v254
    %v1023 = vunpack.c.l.b16 %v255
    %v1024 = vunpack.c.l.b16 %v256
    %v1025 = vunpack.c.l.b16 %v257
    %v1026 = vunpack.c.l.b16 %v258
    %v1027 = vunpack.c.l.b16 %v259
    %v1028 = vunpack.c.l.b16 %v260
    %v1029 = vunpack.c.l.b16 %v261
    %v1030 = vunpack.c.l.b16 %v262
    %v1031 = vunpack.c.l.b16 %v263
    %v1032 = vunpack.c.l.b16 %v264
    %v1033 = vunpack.c.l.b16 %v265
    %v1034 = vunpack.c.l.b16 %v266
    %v1035 = vunpack.c.l.b16 %v267
    %v1036 = vunpack.c.l.b16 %v268
    %v1037 = vunpack.c.l.b16 %v269
    %v1038 = vunpack.c.l.b16 %v270
    %v1039 = vunpack.c.l.b16 %v271
    %v1040 = vunpack.c.l.b16 %v272
    %v1041 = vunpack.c.l.b16 %v273
    %v1042 = vunpack.c.l.b16 %v274
    %v1043 = vunpack.c.l.b16 %v275
    %v1044 = vunpack.c.l.b16 %v276
    %v1045 = vunpack.c.l.b16 %v277
    %v1046 = vunpack.c.l.b16 %v278
    %v1047 = vunpack.c.l.b16 %v279
    %v1048 = vunpack.c.l.b16 %v280
    %v1049 = vunpack.c.l.b16 %v281
    %v1050 = vunpack.c.l.b16 %v282
    %v1051 = vunpack.c.l.b16 %v283
    %v1052 = vunpack.c.l.b16 %v284
    %v1053 = vunpack.c.l.b16 %v285
    %v1054 = vunpack.c.l.b16 %v286
    %v1055 = vunpack.c.l.b16 %v287
    %v1056 = vunpack.c.l.b16 %v288
    %v1057 = vunpack.c.l.b16 %v289
    %v1058 = vunpack.c.l.b16 %v290
    %v1059 = vunpack.c.l.b16 %v291
    %v1060 = vunpack.c.l.b16 %v292
    %v1061 = vunpack.c.l.b16 %v293
    %v1062 = vunpack.c.l.b16 %v294
    %v1063 = vunpack.c.l.b16 %v295
    %v1064 = vunpack.c.l.b16 %v296
    %v1065 = vunpack.c.l.b16 %v297
    %v1066 = vunpack.c.l.b16 %v298
    %v1067 = vunpack.c.l.b16 %v299
    %v1068 = vunpack.c.l.b16 %v300
    %v1069 = vunpack.c.l.b16 %v301
    %v1070 = vunpack.c.l.b16 %v302
    %v1071 = vunpack.c.l.b16 %v303
    %v1072 = vunpack.c.l.b16 %v304
    %v1073 = vunpack.c.l.b16 %v305
    %v1074 = vunpack.c.l.b16 %v306
    %v1075 = vunpack.c.l.b16 %v307
    %v1076 = vunpack.c.l.b16 %v308
    %v1077 = vunpack.c.l.b16 %v309
    %v1078 = vunpack.c.l.b16 %v310
    %v1079 = vunpack.c.l.b16 %v311
    %v1080 = vunpack.c.l.b16 %v312
    %v1081 = vunpack.c.l.b16 %v313
    %v1082 = vunpack.c.l.b16 %v314
    %v1083 = vunpack.c.l.b16 %v315
    %v1084 = vunpack.c.l.b16 %v316
    %v1085 = vunpack.c.l.b16 %v317
    %v1086 = vunpack.c.l.b16 %v318
    %v1087 = vunpack.c.l.b16 %v319
    %v1088 = vunpack.c.l.b16 %v320
    %v1089 = vunpack.c.l.b16 %v321
    %v1090 = vunpack.c.l.b16 %v322
    %v1091 = vunpack.c.l.b16 %v323
    %v1092 = vunpack.c.l.b16 %v324
    %v1093 = vunpack.c.l.b16 %v325
    %v1094 = vunpack.c.l.b16 %v326
    %v1095 = vunpack.c.l.b16 %v327
    %v1096 = vunpack.c.l.b16 %v328
    %v1097 = vunpack.c.l.b16 %v329
    %v1098 = vunpack.c.l.b16 %v330
    %v1099 = vunpack.c.l.b16 %v331
    %v1100 = vunpack.c.l.b16 %v332
    %v1101 = vunpack.c.l.b16 %v333
    %v1102 = vunpack.c.l.b16 %v334
    %v1103 = vunpack.c.l.b16 %v335
    %v1104 = vunpack.c.l.b16 %v336
    %v1105 = vunpack.c.l.b16 %v337
    %v1106 = vunpack.c.l.b16 %v338
    %v1107 = vunpack.c.l.b16 %v339
    %v1108 = vunpack.c.l.b16 %v340
    %v1109 = vunpack.c.l.b16 %v341
    %v1110 = vunpack.c.l.b16 %v342
    %v1111 = vunpack.c.l.b16 %v343
    %v1112 = vunpack.c.l.b16 %v344
    %v1113 = vunpack.c.l.b16 %v345
    %v1114 = vunpack.c.l.b16 %v346
    %v1115 = vunpack.c.l.b16 %v347
    %v1116 = vunpack.c.l.b16 %v348
    %v1117 = vunpack.c.l.b16 %v349
    %v1118 = vunpack.c.l.b16 %v350
    %v1119 = vunpack.c.l.b16 %v351
    %v1120 = vunpack.c.l.b16 %v352
    %v1121 = vunpack.c.l.b16 %v353
    %v1122 = vunpack.c.l.b16 %v354
    %v1123 = vunpack.c.l.b16 %v355
    %v1124 = vunpack.c.l.b16 %v356
    %v1125 = vunpack.c.l.b16 %v357
    %v1126 = vunpack.c.l.b16 %v358
    %v1127 = vunpack.c.l.b16 %v359
    %v1128 = vunpack.c.l.b16 %v360
    %v1129 = vunpack.c.l.b16 %v361
    %v1130 = vunpack.c.l.b16 %v362
    %v1131 = vunpack.c.l.b16 %v363
    %v1132 = vunpack.c.l.b16 %v364
    %v1133 = vunpack.c.l.b16 %v365
    %v1134 = vunpack.c.l.b16 %v366
    %v1135 = vunpack.c.l.b16 %v367
    %v1136 = vunpack.c.l.b16 %v368
    %v1137 = vunpack.c.l.b16 %v369
    %v1138 = vunpack.c.l.b16 %v370
    %v1139 = vunpack.c.l.b16 %v371
    %v1140 = vunpack.c.l.b16 %v372
    %v1141 = vunpack.c.l.b16 %v373
    %v1142 = vunpack.c.l.b16 %v374
    %v1143 = vunpack.c.l.b16 %v375
    %v1144 = vunpack.c.l.b16 %v376
    %v1145 = vunpack.c.l.b16 %v377
    %v1146 = vunpack.c.l.b16 %v378
    %v1147 = vunpack.c.l.b16 %v379
    %v1148 = vunpack.c.l.b16 %v380
    %v1149 = vunpack.c.l.b16 %v381
    %v1150 = vunpack.c.l.b16 %v382
    %v1151 = vunpack.c.l.b16 %v383
    %v1152 = vunpack.c.l.b16 %v384
    %v1153 = vunpack.c.l.b16 %v385
    %v1154 = vunpack.c.l.b16 %v386
    %v1155 = vunpack.c.l.b16 %v387
    %v1156 = vunpack.c.l.b16 %v388
    %v1157 = vunpack.c.l.b16 %v389
    %v1158 = vunpack.c.l.b16 %v390
    %v1159 = vunpack.c.l.b16 %v391
    %v1160 = vunpack.c.l.b16 %v392
    %v1161 = vunpack.c.l.b16 %v393
    %v1162 = vunpack.c.l.b16 %v394
    %v1163 = vunpack.c.l.b16 %v395
    %v1164 = vunpack.c.l.b16 %v396
    %v1165 = vunpack.c.l.b16 %v397
    %v1166 = vunpack.c.l.b16 %v398
    %v1167 = vunpack.c.l.b16 %v399
    %v1168 = vunpack.c.l.b16 %v400
    %v1169 = vunpack.c.l.b16 %v401
    %v1170 = vunpack.c.l.b16 %v402
    %v1171 = vunpack.c.l.b16 %v403
    %v1172 = vunpack.c.l.b16 %v404
    %v1173 = vunpack.c.l.b16 %v405
    %v1174 = vunpack.c.l.b16 %v406
    %v1175 = vunpack.c.l.b16 %v407
    %v1176 = vunpack.c.l.b16 %v408
    %v1177 = vunpack.c.l.b16 %v409
    %v1178 = vunpack.c.l.b16 %v410
    %v1179 = vunpack.c.l.b16 %v411
    %v1180 = vunpack.c.l.b16 %v412
    %v1181 = vunpack.c.l.b16 %v413
    %v1182 = vunpack.c.l.b16 %v414
    %v1183 = vunpack.c.l.b16 %v415
    %v1184 = vunpack.c.l.b16 %v416
    %v1185 = vunpack.c.l.b16 %v417
    %v1186 = vunpack.c.l.b16 %v418
    %v1187 = vunpack.c.l.b16 %v419
    %v1188 = vunpack.c.l.b16 %v420
    %v1189 = vunpack.c.l.b16 %v421
    %v1190 = vunpack.c.l.b16 %v422
    %v1191 = vunpack.c.l.b16 %v423
    %v1192 = vunpack.c.l.b16 %v424
    %v1193 = vunpack.c.l.b16 %v425
    %v1194 = vunpack.c.l.b16 %v426
    %v1195 = vunpack.c.l.b16 %v427
    %v1196 = vunpack.c.l.b16 %v428
    %v1197 = vunpack.c.l.b16 %v429
    %v1198 = vunpack.c.l.b16 %v430
    %v1199 = vunpack.c.l.b16 %v431
    %v1200 = vunpack.c.l.b16 %v432
    %v1201 = vunpack.c.l.b16 %v433
    %v1202 = vunpack.c.l.b16 %v434
    %v1203 = vunpack.c.l.b16 %v435
    %v1204 = vunpack.c.l.b16 %v436
    %v1205 = vunpack.c.l.b16 %v437
    %v1206 = vunpack.c.l.b16 %v438
    %v1207 = vunpack.c.l.b16 %v439
    %v1208 = vunpack.c.l.b16 %v440
    %v1209 = vunpack.c.l.b16 %v441
    %v1210 = vunpack.c.l.b16 %v442
    %v1211 = vunpack.c.l.b16 %v443
    %v1212 = vunpack.c.l.b16 %v444
    %v1213 = vunpack.c.l.b16 %v445
    %v1214 = vunpack.c.l.b16 %v446
    %v1215 = vunpack.c.l.b16 %v447
    %v1216 = vunpack.c.l.b16 %v448
    %v1217 = vunpack.c.l.b16 %v449
    %v1218 = vunpack.c.l.b16 %v450
    %v1219 = vunpack.c.l.b16 %v451
    %v1220 = vunpack.c.l.b16 %v452
    %v1221 = vunpack.c.l.b16 %v453
    %v1222 = vunpack.c.l.b16 %v454
    %v1223 = vunpack.c.l.b16 %v455
    %v1224 = vunpack.c.l.b16 %v456
    %v1225 = vunpack.c.l.b16 %v457
    %v1226 = vunpack.c.l.b16 %v458
    %v1227 = vunpack.c.l.b16 %v459
    %v1228 = vunpack.c.l.b16 %v460
    %v1229 = vunpack.c.l.b16 %v461
    %v1230 = vunpack.c.l.b16 %v462
    %v1231 = vunpack.c.l.b16 %v463
    %v1232 = vunpack.c.l.b16 %v464
    %v1233 = vunpack.c.l.b16 %v465
    %v1234 = vunpack.c.l.b16 %v466
    %v1235 = vunpack.c.l.b16 %v467
    %v1236 = vunpack.c.l.b16 %v468
    %v1237 = vunpack.c.l.b16 %v469
    %v1238 = vunpack.c.l.b16 %v470
    %v1239 = vunpack.c.l.b16 %v471
    %v1240 = vunpack.c.l.b16 %v472
    %v1241 = vunpack.c.l.b16 %v473
    %v1242 = vunpack.c.l.b16 %v474
    %v1243 = vunpack.c.l.b16 %v475
    %v1244 = vunpack.c.l.b16 %v476
    %v1245 = vunpack.c.l.b16 %v477
    %v1246 = vunpack.c.l.b16 %v478
    %v1247 = vunpack.c.l.b16 %v479
    %v1248 = vunpack.c.l.b16 %v480
    %v1249 = vunpack.c.l.b16 %v481
    %v1250 = vunpack.c.l.b16 %v482
    %v1251 = vunpack.c.l.b16 %v483
    %v1252 = vunpack.c.l.b16 %v484
    %v1253 = vunpack.c.l.b16 %v485
    %v1254 = vunpack.c.l.b16 %v486
    %v1255 = vunpack.c.l.b16 %v487
    %v1256 = vpack.c.b16 %v873, %v872
    %v1257 = vpack.c.b16 %v875, %v874
    %v1258 = vpack.c.b16 %v877, %v876
    %v1259 = vpack.c.b16 %v879, %v878
    %v1260 = vpack.c.b16 %v881, %v880
    %v1261 = vpack.c.b16 %v883, %v882
    %v1262 = vpack.c.b16 %v885, %v884
    %v1263 = vpack.c.b16 %v887, %v886
    %v1264 = vpack.c.b16 %v889, %v888
    %v1265 = vpack.c.b16 %v891, %v890
    %v1266 = vpack.c.b16 %v893, %v892
    %v1267 = vpack.c.b16 %v895, %v894
    %v1268 = vpack.c.b16 %v897, %v896
    %v1269 = vpack.c.b16 %v899, %v898
    %v1270 = vpack.c.b16 %v901, %v900
    %v1271 = vpack.c.b16 %v903, %v902
    %v1272 = vpack.c.b16 %v905, %v904
    %v1273 = vpack.c.b16 %v907, %v906
    %v1274 = vpack.c.b16 %v909, %v908
    %v1275 = vpack.c.b16 %v911, %v910
    %v1276 = vpack.c.b16 %v913, %v912
    %v1277 = vpack.c.b16 %v915, %v914
    %v1278 = vpack.c.b16 %v917, %v916
    %v1279 = vpack.c.b16 %v919, %v918
    %v1280 = vpack.c.b16 %v921, %v920
    %v1281 = vpack.c.b16 %v923, %v922
    %v1282 = vpack.c.b16 %v925, %v924
    %v1283 = vpack.c.b16 %v927, %v926
    %v1284 = vpack.c.b16 %v929, %v928
    %v1285 = vpack.c.b16 %v931, %v930
    %v1286 = vpack.c.b16 %v933, %v932
    %v1287 = vpack.c.b16 %v935, %v934
    %v1288 = vpack.c.b16 %v937, %v936
    %v1289 = vpack.c.b16 %v939, %v938
    %v1290 = vpack.c.b16 %v941, %v940
    %v1291 = vpack.c.b16 %v943, %v942
    %v1292 = vpack.c.b16 %v945, %v944
    %v1293 = vpack.c.b16 %v947, %v946
    %v1294 = vpack.c.b16 %v949, %v948
    %v1295 = vpack.c.b16 %v951, %v950
    %v1296 = vpack.c.b16 %v953, %v952
    %v1297 = vpack.c.b16 %v955, %v954
    %v1298 = vpack.c.b16 %v957, %v956
    %v1299 = vpack.c.b16 %v959, %v958
    %v1300 = vpack.c.b16 %v961, %v960
    %v1301 = vpack.c.b16 %v963, %v962
    %v1302 = vpack.c.b16 %v965, %v964
    %v1303 = vpack.c.b16 %v967, %v966
    %v1304 = vpack.c.b16 %v969, %v968
    %v1305 = vpack.c.b16 %v971, %v970
    %v1306 = vpack.c.b16 %v973, %v972
    %v1307 = vpack.c.b16 %v975, %v974
    %v1308 = vpack.c.b16 %v977, %v976
    %v1309 = vpack.c.b16 %v979, %v978
    %v1310 = vpack.c.b16 %v981, %v980
    %v1311 = vpack.c.b16 %v983, %v982
    %v1312 = vpack.c.b16 %v985, %v984
    %v1313 = vpack.c.b16 %v987, %v986
    %v1314 = vpack.c.b16 %v989, %v988
    %v1315 = vpack.c.b16 %v991, %v990
    %v1316 = vpack.c.b16 %v993, %v992
    %v1317 = vpack.c.b16 %v995, %v994
    %v1318 = vpack.c.b16 %v997, %v996
    %v1319 = vpack.c.b16 %v999, %v998
    %v1320 = vpack.c.b16 %v1001, %v1000
    %v1321 = vpack.c.b16 %v1003, %v1002
    %v1322 = vpack.c.b16 %v1005, %v1004
    %v1323 = vpack.c.b16 %v1007, %v1006
    %v1324 = vpack.c.b16 %v1009, %v1008
    %v1325 = vpack.c.b16 %v1011, %v1010
    %v1326 = vpack.c.b16 %v1013, %v1012
    %v1327 = vpack.c.b16 %v1015, %v1014
    %v1328 = vpack.c.b16 %v1017, %v1016
    %v1329 = vpack.c.b16 %v1019, %v1018
    %v1330 = vpack.c.b16 %v1021, %v1020
    %v1331 = vpack.c.b16 %v1023, %v1022
    %v1332 = vpack.c.b16 %v1025, %v1024
    %v1333 = vpack.c.b16 %v1027, %v1026
    %v1334 = vpack.c.b16 %v1029, %v1028
    %v1335 = vpack.c.b16 %v1031, %v1030
    %v1336 = vpack.c.b16 %v1033, %v1032
    %v1337 = vpack.c.b16 %v1035, %v1034
    %v1338 = vpack.c.b16 %v1037, %v1036
    %v1339 = vpack.c.b16 %v1039, %v1038
    %v1340 = vpack.c.b16 %v1041, %v1040
    %v1341 = vpack.c.b16 %v1043, %v1042
    %v1342 = vpack.c.b16 %v1045, %v1044
    %v1343 = vpack.c.b16 %v1047, %v1046
    %v1344 = vpack.c.b16 %v1049, %v1048
    %v1345 = vpack.c.b16 %v1051, %v1050
    %v1346 = vpack.c.b16 %v1053, %v1052
    %v1347 = vpack.c.b16 %v1055, %v1054
    %v1348 = vpack.c.b16 %v1057, %v1056
    %v1349 = vpack.c.b16 %v1059, %v1058
    %v1350 = vpack.c.b16 %v1061, %v1060
    %v1351 = vpack.c.b16 %v1063, %v1062
    %v1352 = vpack.c.b16 %v1065, %v1064
    %v1353 = vpack.c.b16 %v1067, %v1066
    %v1354 = vpack.c.b16 %v1069, %v1068
    %v1355 = vpack.c.b16 %v1071, %v1070
    %v1356 = vpack.c.b16 %v1073, %v1072
    %v1357 = vpack.c.b16 %v1075, %v1074
    %v1358 = vpack.c.b16 %v1077, %v1076
    %v1359 = vpack.c.b16 %v1079, %v1078
    %v1360 = vpack.c.b16 %v1081, %v1080
    %v1361 = vpack.c.b16 %v1083, %v1082
    %v1362 = vpack.c.b16 %v1085, %v1084
    %v1363 = vpack.c.b16 %v1087, %v1086
    %v1364 = vpack.c.b16 %v1089, %v1088
    %v1365 = vpack.c.b16 %v1091, %v1090
    %v1366 = vpack.c.b16 %v1093, %v1092
    %v1367 = vpack.c.b16 %v1095, %v1094
    %v1368 = vpack.c.b16 %v1097, %v1096
    %v1369 = vpack.c.b16 %v1099, %v1098
    %v1370 = vpack.c.b16 %v1101, %v1100
    %v1371 = vpack.c.b16 %v1103, %v1102
    %v1372 = vpack.c.b16 %v1105, %v1104
    %v1373 = vpack.c.b16 %v1107, %v1106
    %v1374 = vpack.c.b16 %v1109, %v1108
    %v1375 = vpack.c.b16 %v1111, %v1110
    %v1376 = vpack.c.b16 %v1113, %v1112
    %v1377 = vpack.c.b16 %v1115, %v1114
    %v1378 = vpack.c.b16 %v1117, %v1116
    %v1379 = vpack.c.b16 %v1119, %v1118
    %v1380 = vpack.c.b16 %v1121, %v1120
    %v1381 = vpack.c.b16 %v1123, %v1122
    %v1382 = vpack.c.b16 %v1125, %v1124
    %v1383 = vpack.c.b16 %v1127, %v1126
    %v1384 = vpack.c.b16 %v1129, %v1128
    %v1385 = vpack.c.b16 %v1131, %v1130
    %v1386 = vpack.c.b16 %v1133, %v1132
    %v1387 = vpack.c.b16 %v1135, %v1134
    %v1388 = vpack.c.b16 %v1137, %v1136
    %v1389 = vpack.c.b16 %v1139, %v1138
    %v1390 = vpack.c.b16 %v1141, %v1140
    %v1391 = vpack.c.b16 %v1143, %v1142
    %v1392 = vpack.c.b16 %v1145, %v1144
    %v1393 = vpack.c.b16 %v1147, %v1146
    %v1394 = vpack.c.b16 %v1149, %v1148
    %v1395 = vpack.c.b16 %v1151, %v1150
    %v1396 = vpack.c.b16 %v1153, %v1152
    %v1397 = vpack.c.b16 %v1155, %v1154
    %v1398 = vpack.c.b16 %v1157, %v1156
    %v1399 = vpack.c.b16 %v1159, %v1158
    %v1400 = vpack.c.b16 %v1161, %v1160
    %v1401 = vpack.c.b16 %v1163, %v1162
    %v1402 = vpack.c.b16 %v1165, %v1164
    %v1403 = vpack.c.b16 %v1167, %v1166
    %v1404 = vpack.c.b16 %v1169, %v1168
    %v1405 = vpack.c.b16 %v1171, %v1170
    %v1406 = vpack.c.b16 %v1173, %v1172
    %v1407 = vpack.c.b16 %v1175, %v1174
    %v1408 = vpack.c.b16 %v1177, %v1176
    %v1409 = vpack.c.b16 %v1179, %v1178
    %v1410 = vpack.c.b16 %v1181, %v1180
    %v1411 = vpack.c.b16 %v1183, %v1182
    %v1412 = vpack.c.b16 %v1185, %v1184
    %v1413 = vpack.c.b16 %v1187, %v1186
    %v1414 = vpack.c.b16 %v1189, %v1188
    %v1415 = vpack.c.b16 %v1191, %v1190
    %v1416 = vpack.c.b16 %v1193, %v1192
    %v1417 = vpack.c.b16 %v1195, %v1194
    %v1418 = vpack.c.b16 %v1197, %v1196
    %v1419 = vpack.c.b16 %v1199, %v1198
    %v1420 = vpack.c.b16 %v1201, %v1200
    %v1421 = vpack.c.b16 %v1203, %v1202
    %v1422 = vpack.c.b16 %v1205, %v1204
    %v1423 = vpack.c.b16 %v1207, %v1206
    %v1424 = vpack.c.b16 %v1209, %v1208
    %v1425 = vpack.c.b16 %v1211, %v1210
    %v1426 = vpack.c.b16 %v1213, %v1212
    %v1427 = vpack.c.b16 %v1215, %v1214
    %v1428 = vpack.c.b16 %v1217, %v1216
    %v1429 = vpack.c.b16 %v1219, %v1218
    %v1430 = vpack.c.b16 %v1221, %v1220
    %v1431 = vpack.c.b16 %v1223, %v1222
    %v1432 = vpack.c.b16 %v1225, %v1224
    %v1433 = vpack.c.b16 %v1227, %v1226
    %v1434 = vpack.c.b16 %v1229, %v1228
    %v1435 = vpack.c.b16 %v1231, %v1230
    %v1436 = vpack.c.b16 %v1233, %v1232
    %v1437 = vpack.c.b16 %v1235, %v1234
    %v1438 = vpack.c.b16 %v1237, %v1236
    %v1439 = vpack.c.b16 %v1239, %v1238
    %v1440 = vpack.c.b16 %v1241, %v1240
    %v1441 = vpack.c.b16 %v1243, %v1242
    %v1442 = vpack.c.b16 %v1245, %v1244
    %v1443 = vpack.c.b16 %v1247, %v1246
    %v1444 = vpack.c.b16 %v1249, %v1248
    %v1445 = vpack.c.b16 %v1251, %v1250
    %v1446 = vpack.c.b16 %v1253, %v1252
    %v1447 = vpack.c.b16 %v1255, %v1254
    %1640 = vmatprep.subr.bf16.mxu0 0
    %1641 = vmatpush1.bf16.msra.mxu0 %v1256
    %1642 = vmatprep.subr.bf16.mxu0 0
    %1643 = vmatpush1.bf16.msra.mxu0 %v1257
    %1644 = vmatprep.subr.bf16.mxu0 0
    %1645 = vmatpush1.bf16.msra.mxu0 %v1258
    %1646 = vmatprep.subr.bf16.mxu0 0
    %1647 = vmatpush1.bf16.msra.mxu0 %v1259
    %1648 = vmatprep.subr.bf16.mxu0 0
    %1649 = vmatpush1.bf16.msra.mxu0 %v1260
    %1650 = vmatprep.subr.bf16.mxu0 0
    %1651 = vmatpush1.bf16.msra.mxu0 %v1261
    %1652 = vmatprep.subr.bf16.mxu0 0
    %1653 = vmatpush1.bf16.msra.mxu0 %v1262
    %1654 = vmatprep.subr.bf16.mxu0 0
    %1655 = vmatpush1.bf16.msra.mxu0 %v1263
    %1656 = vmatprep.subr.bf16.mxu0 0
    %1657 = vmatpush1.bf16.msra.mxu0 %v1264
    %1658 = vmatprep.subr.bf16.mxu0 0
    %1659 = vmatpush1.bf16.msra.mxu0 %v1265
    %1660 = vmatprep.subr.bf16.mxu0 0
    %1661 = vmatpush1.bf16.msra.mxu0 %v1266
    %1662 = vmatprep.subr.bf16.mxu0 0
    %1663 = vmatpush1.bf16.msra.mxu0 %v1267
    %1664 = vmatprep.subr.bf16.mxu0 0
    %1665 = vmatpush1.bf16.msra.mxu0 %v1268
    %1666 = vmatprep.subr.bf16.mxu0 0
    %1667 = vmatpush1.bf16.msra.mxu0 %v1269
    %1668 = vmatprep.subr.bf16.mxu0 0
    %1669 = vmatpush1.bf16.msra.mxu0 %v1270
    %1670 = vmatprep.subr.bf16.mxu0 0
    %1671 = vmatpush1.bf16.msra.mxu0 %v1271
    %1672 = vmatprep.mubr.bf16.mxu0 %v81
    %1673 = vmatmul.mubr.bf16.gmra.mrb[0].mxu0 %v80
    %v1674 = vpop.f32.mrb[0].mxu0
    %v1675 = vadd.f32 0.0, %v1674
    %v1676 = vpop.f32.mrb[0].mxu0
    %v1677 = vpop.f32.mrb[0].mxu0
    %v1678 = vadd.f32 0.0, %v1677
    %v1679 = vpop.f32.mrb[0].mxu0
    %1680 = vdwg.mxu0
    %1681 = vmatprep.subr.bf16.mxu0 0
    %1682 = vmatpush1.bf16.msra.mxu0 %v1272
    %1683 = vmatprep.subr.bf16.mxu0 0
    %1684 = vmatpush1.bf16.msra.mxu0 %v1273
    %1685 = vmatprep.subr.bf16.mxu0 0
    %1686 = vmatpush1.bf16.msra.mxu0 %v1274
    %1687 = vmatprep.subr.bf16.mxu0 0
    %1688 = vmatpush1.bf16.msra.mxu0 %v1275
    %1689 = vmatprep.subr.bf16.mxu0 0
    %1690 = vmatpush1.bf16.msra.mxu0 %v1276
    %1691 = vmatprep.subr.bf16.mxu0 0
    %1692 = vmatpush1.bf16.msra.mxu0 %v1277
    %1693 = vmatprep.subr.bf16.mxu0 0
    %1694 = vmatpush1.bf16.msra.mxu0 %v1278
    %1695 = vmatprep.subr.bf16.mxu0 0
    %1696 = vmatpush1.bf16.msra.mxu0 %v1279
    %1697 = vmatprep.subr.bf16.mxu0 0
    %1698 = vmatpush1.bf16.msra.mxu0 %v1280
    %1699 = vmatprep.subr.bf16.mxu0 0
    %1700 = vmatpush1.bf16.msra.mxu0 %v1281
    %1701 = vmatprep.subr.bf16.mxu0 0
    %1702 = vmatpush1.bf16.msra.mxu0 %v1282
    %1703 = vmatprep.subr.bf16.mxu0 0
    %1704 = vmatpush1.bf16.msra.mxu0 %v1283
    %1705 = vmatprep.subr.bf16.mxu0 0
    %1706 = vmatpush1.bf16.msra.mxu0 %v1284
    %1707 = vmatprep.subr.bf16.mxu0 0
    %1708 = vmatpush1.bf16.msra.mxu0 %v1285
    %1709 = vmatprep.subr.bf16.mxu0 0
    %1710 = vmatpush1.bf16.msra.mxu0 %v1286
    %1711 = vmatprep.subr.bf16.mxu0 0
    %1712 = vmatpush1.bf16.msra.mxu0 %v1287
    %1713 = vmatprep.mubr.bf16.mxu0 %v83
    %1714 = vmatmul.mubr.bf16.gmra.mrb[0].mxu0 %v82
    %v1715 = vpop.f32.mrb[0].mxu0
    %v1716 = vadd.f32 %v1675, %v1715
    %v1717 = vpop.f32.mrb[0].mxu0
    %v1718 = vpop.f32.mrb[0].mxu0
    %v1719 = vadd.f32 %v1678, %v1718
    %v1720 = vpop.f32.mrb[0].mxu0
    %1721 = vdwg.mxu0
    %1722 = vmatprep.subr.bf16.mxu0 0
    %1723 = vmatpush1.bf16.msra.mxu0 %v1288
    %1724 = vmatprep.subr.bf16.mxu0 0
    %1725 = vmatpush1.bf16.msra.mxu0 %v1289
    %1726 = vmatprep.subr.bf16.mxu0 0
    %1727 = vmatpush1.bf16.msra.mxu0 %v1290
    %1728 = vmatprep.subr.bf16.mxu0 0
    %1729 = vmatpush1.bf16.msra.mxu0 %v1291
    %1730 = vmatprep.subr.bf16.mxu0 0
    %1731 = vmatpush1.bf16.msra.mxu0 %v1292
    %1732 = vmatprep.subr.bf16.mxu0 0
    %1733 = vmatpush1.bf16.msra.mxu0 %v1293
    %1734 = vmatprep.subr.bf16.mxu0 0
    %1735 = vmatpush1.bf16.msra.mxu0 %v1294
    %1736 = vmatprep.subr.bf16.mxu0 0
    %1737 = vmatpush1.bf16.msra.mxu0 %v1295
    %1738 = vmatprep.subr.bf16.mxu0 0
    %1739 = vmatpush1.bf16.msra.mxu0 %v1296
    %1740 = vmatprep.subr.bf16.mxu0 0
    %1741 = vmatpush1.bf16.msra.mxu0 %v1297
    %1742 = vmatprep.subr.bf16.mxu0 0
    %1743 = vmatpush1.bf16.msra.mxu0 %v1298
    %1744 = vmatprep.subr.bf16.mxu0 0
    %1745 = vmatpush1.bf16.msra.mxu0 %v1299
    %1746 = vmatprep.subr.bf16.mxu0 0
    %1747 = vmatpush1.bf16.msra.mxu0 %v1300
    %1748 = vmatprep.subr.bf16.mxu0 0
    %1749 = vmatpush1.bf16.msra.mxu0 %v1301
    %1750 = vmatprep.subr.bf16.mxu0 0
    %1751 = vmatpush1.bf16.msra.mxu0 %v1302
    %1752 = vmatprep.subr.bf16.mxu0 0
    %1753 = vmatpush1.bf16.msra.mxu0 %v1303
    %1754 = vmatprep.mubr.bf16.mxu0 %v85
    %1755 = vmatmul.mubr.bf16.gmra.mrb[0].mxu0 %v84
    %v1756 = vpop.f32.mrb[0].mxu0
    %v1757 = vadd.f32 %v1716, %v1756
    %v1758 = vpop.f32.mrb[0].mxu0
    %v1759 = vpop.f32.mrb[0].mxu0
    %v1760 = vadd.f32 %v1719, %v1759
    %v1761 = vpop.f32.mrb[0].mxu0
    %1762 = vdwg.mxu0
    %1763 = vmatprep.subr.bf16.mxu0 0
    %1764 = vmatpush1.bf16.msra.mxu0 %v1304
    %1765 = vmatprep.subr.bf16.mxu0 0
    %1766 = vmatpush1.bf16.msra.mxu0 %v1305
    %1767 = vmatprep.subr.bf16.mxu0 0
    %1768 = vmatpush1.bf16.msra.mxu0 %v1306
    %1769 = vmatprep.subr.bf16.mxu0 0
    %1770 = vmatpush1.bf16.msra.mxu0 %v1307
    %1771 = vmatprep.subr.bf16.mxu0 0
    %1772 = vmatpush1.bf16.msra.mxu0 %v1308
    %1773 = vmatprep.subr.bf16.mxu0 0
    %1774 = vmatpush1.bf16.msra.mxu0 %v1309
    %1775 = vmatprep.subr.bf16.mxu0 0
    %1776 = vmatpush1.bf16.msra.mxu0 %v1310
    %1777 = vmatprep.subr.bf16.mxu0 0
    %1778 = vmatpush1.bf16.msra.mxu0 %v1311
    %1779 = vmatprep.subr.bf16.mxu0 0
    %1780 = vmatpush1.bf16.msra.mxu0 %v1312
    %1781 = vmatprep.subr.bf16.mxu0 0
    %1782 = vmatpush1.bf16.msra.mxu0 %v1313
    %1783 = vmatprep.subr.bf16.mxu0 0
    %1784 = vmatpush1.bf16.msra.mxu0 %v1314
    %1785 = vmatprep.subr.bf16.mxu0 0
    %1786 = vmatpush1.bf16.msra.mxu0 %v1315
    %1787 = vmatprep.subr.bf16.mxu0 0
    %1788 = vmatpush1.bf16.msra.mxu0 %v1316
    %1789 = vmatprep.subr.bf16.mxu0 0
    %1790 = vmatpush1.bf16.msra.mxu0 %v1317
    %1791 = vmatprep.subr.bf16.mxu0 0
    %1792 = vmatpush1.bf16.msra.mxu0 %v1318
    %1793 = vmatprep.subr.bf16.mxu0 0
    %1794 = vmatpush1.bf16.msra.mxu0 %v1319
    %1795 = vmatprep.mubr.bf16.mxu0 %v87
    %1796 = vmatmul.mubr.bf16.gmra.mrb[0].mxu0 %v86
    %v1797 = vpop.f32.mrb[0].mxu0
    %v1798 = vadd.f32 %v1757, %v1797
    %v1799 = vpop.f32.mrb[0].mxu0
    %v1800 = vpop.f32.mrb[0].mxu0
    %v1801 = vadd.f32 %v1760, %v1800
    %v1802 = vpop.f32.mrb[0].mxu0
    %1803 = vdwg.mxu0
    %1804 = vmatprep.subr.bf16.mxu0 0
    %1805 = vmatpush1.bf16.msra.mxu0 %v1320
    %1806 = vmatprep.subr.bf16.mxu0 0
    %1807 = vmatpush1.bf16.msra.mxu0 %v1321
    %1808 = vmatprep.subr.bf16.mxu0 0
    %1809 = vmatpush1.bf16.msra.mxu0 %v1322
    %1810 = vmatprep.subr.bf16.mxu0 0
    %1811 = vmatpush1.bf16.msra.mxu0 %v1323
    %1812 = vmatprep.subr.bf16.mxu0 0
    %1813 = vmatpush1.bf16.msra.mxu0 %v1324
    %1814 = vmatprep.subr.bf16.mxu0 0
    %1815 = vmatpush1.bf16.msra.mxu0 %v1325
    %1816 = vmatprep.subr.bf16.mxu0 0
    %1817 = vmatpush1.bf16.msra.mxu0 %v1326
    %1818 = vmatprep.subr.bf16.mxu0 0
    %1819 = vmatpush1.bf16.msra.mxu0 %v1327
    %1820 = vmatprep.subr.bf16.mxu0 0
    %1821 = vmatpush1.bf16.msra.mxu0 %v1328
    %1822 = vmatprep.subr.bf16.mxu0 0
    %1823 = vmatpush1.bf16.msra.mxu0 %v1329
    %1824 = vmatprep.subr.bf16.mxu0 0
    %1825 = vmatpush1.bf16.msra.mxu0 %v1330
    %1826 = vmatprep.subr.bf16.mxu0 0
    %1827 = vmatpush1.bf16.msra.mxu0 %v1331
    %1828 = vmatprep.subr.bf16.mxu0 0
    %1829 = vmatpush1.bf16.msra.mxu0 %v1332
    %1830 = vmatprep.subr.bf16.mxu0 0
    %1831 = vmatpush1.bf16.msra.mxu0 %v1333
    %1832 = vmatprep.subr.bf16.mxu0 0
    %1833 = vmatpush1.bf16.msra.mxu0 %v1334
    %1834 = vmatprep.subr.bf16.mxu0 0
    %1835 = vmatpush1.bf16.msra.mxu0 %v1335
    %1836 = vmatprep.mubr.bf16.mxu0 %v89
    %1837 = vmatmul.mubr.bf16.gmra.mrb[0].mxu0 %v88
    %v1838 = vpop.f32.mrb[0].mxu0
    %v1839 = vadd.f32 %v1798, %v1838
    %v1840 = vpop.f32.mrb[0].mxu0
    %v1841 = vpop.f32.mrb[0].mxu0
    %v1842 = vadd.f32 %v1801, %v1841
    %v1843 = vpop.f32.mrb[0].mxu0
    %1844 = vdwg.mxu0
    %1845 = vmatprep.subr.bf16.mxu0 0
    %1846 = vmatpush1.bf16.msra.mxu0 %v1336
    %1847 = vmatprep.subr.bf16.mxu0 0
    %1848 = vmatpush1.bf16.msra.mxu0 %v1337
    %1849 = vmatprep.subr.bf16.mxu0 0
    %1850 = vmatpush1.bf16.msra.mxu0 %v1338
    %1851 = vmatprep.subr.bf16.mxu0 0
    %1852 = vmatpush1.bf16.msra.mxu0 %v1339
    %1853 = vmatprep.subr.bf16.mxu0 0
    %1854 = vmatpush1.bf16.msra.mxu0 %v1340
    %1855 = vmatprep.subr.bf16.mxu0 0
    %1856 = vmatpush1.bf16.msra.mxu0 %v1341
    %1857 = vmatprep.subr.bf16.mxu0 0
    %1858 = vmatpush1.bf16.msra.mxu0 %v1342
    %1859 = vmatprep.subr.bf16.mxu0 0
    %1860 = vmatpush1.bf16.msra.mxu0 %v1343
    %1861 = vmatprep.subr.bf16.mxu0 0
    %1862 = vmatpush1.bf16.msra.mxu0 %v1344
    %1863 = vmatprep.subr.bf16.mxu0 0
    %1864 = vmatpush1.bf16.msra.mxu0 %v1345
    %1865 = vmatprep.subr.bf16.mxu0 0
    %1866 = vmatpush1.bf16.msra.mxu0 %v1346
    %1867 = vmatprep.subr.bf16.mxu0 0
    %1868 = vmatpush1.bf16.msra.mxu0 %v1347
    %1869 = vmatprep.subr.bf16.mxu0 0
    %1870 = vmatpush1.bf16.msra.mxu0 %v1348
    %1871 = vmatprep.subr.bf16.mxu0 0
    %1872 = vmatpush1.bf16.msra.mxu0 %v1349
    %1873 = vmatprep.subr.bf16.mxu0 0
    %1874 = vmatpush1.bf16.msra.mxu0 %v1350
    %1875 = vmatprep.subr.bf16.mxu0 0
    %1876 = vmatpush1.bf16.msra.mxu0 %v1351
    %1877 = vmatprep.mubr.bf16.mxu0 %v91
    %1878 = vmatmul.mubr.bf16.gmra.mrb[0].mxu0 %v90
    %v1879 = vpop.f32.mrb[0].mxu0
    %v1880 = vadd.f32 %v1839, %v1879
    %v1881 = vpop.f32.mrb[0].mxu0
    %v1882 = vpop.f32.mrb[0].mxu0
    %v1883 = vadd.f32 %v1842, %v1882
    %v1884 = vpop.f32.mrb[0].mxu0
    %1885 = vdwg.mxu0
    %1886 = vmatprep.subr.bf16.mxu0 0
    %1887 = vmatpush1.bf16.msra.mxu0 %v1352
    %1888 = vmatprep.subr.bf16.mxu0 0
    %1889 = vmatpush1.bf16.msra.mxu0 %v1353
    %1890 = vmatprep.subr.bf16.mxu0 0
    %1891 = vmatpush1.bf16.msra.mxu0 %v1354
    %1892 = vmatprep.subr.bf16.mxu0 0
    %1893 = vmatpush1.bf16.msra.mxu0 %v1355
    %1894 = vmatprep.subr.bf16.mxu0 0
    %1895 = vmatpush1.bf16.msra.mxu0 %v1356
    %1896 = vmatprep.subr.bf16.mxu0 0
    %1897 = vmatpush1.bf16.msra.mxu0 %v1357
    %1898 = vmatprep.subr.bf16.mxu0 0
    %1899 = vmatpush1.bf16.msra.mxu0 %v1358
    %1900 = vmatprep.subr.bf16.mxu0 0
    %1901 = vmatpush1.bf16.msra.mxu0 %v1359
    %1902 = vmatprep.subr.bf16.mxu0 0
    %1903 = vmatpush1.bf16.msra.mxu0 %v1360
    %1904 = vmatprep.subr.bf16.mxu0 0
    %1905 = vmatpush1.bf16.msra.mxu0 %v1361
    %1906 = vmatprep.subr.bf16.mxu0 0
    %1907 = vmatpush1.bf16.msra.mxu0 %v1362
    %1908 = vmatprep.subr.bf16.mxu0 0
    %1909 = vmatpush1.bf16.msra.mxu0 %v1363
    %1910 = vmatprep.subr.bf16.mxu0 0
    %1911 = vmatpush1.bf16.msra.mxu0 %v1364
    %1912 = vmatprep.subr.bf16.mxu0 0
    %1913 = vmatpush1.bf16.msra.mxu0 %v1365
    %1914 = vmatprep.subr.bf16.mxu0 0
    %1915 = vmatpush1.bf16.msra.mxu0 %v1366
    %1916 = vmatprep.subr.bf16.mxu0 0
    %1917 = vmatpush1.bf16.msra.mxu0 %v1367
    %1918 = vmatprep.mubr.bf16.mxu0 %v93
    %1919 = vmatmul.mubr.bf16.gmra.mrb[0].mxu0 %v92
    %v1920 = vpop.f32.mrb[0].mxu0
    %v1921 = vadd.f32 %v1880, %v1920
    %v1922 = vpop.f32.mrb[0].mxu0
    %v1923 = vpop.f32.mrb[0].mxu0
    %v1924 = vadd.f32 %v1883, %v1923
    %v1925 = vpop.f32.mrb[0].mxu0
    %1926 = vdwg.mxu0
    %1927 = vmatprep.subr.bf16.mxu0 0
    %1928 = vmatpush1.bf16.msra.mxu0 %v1368
    %1929 = vmatprep.subr.bf16.mxu0 0
    %1930 = vmatpush1.bf16.msra.mxu0 %v1369
    %1931 = vmatprep.subr.bf16.mxu0 0
    %1932 = vmatpush1.bf16.msra.mxu0 %v1370
    %1933 = vmatprep.subr.bf16.mxu0 0
    %1934 = vmatpush1.bf16.msra.mxu0 %v1371
    %1935 = vmatprep.subr.bf16.mxu0 0
    %1936 = vmatpush1.bf16.msra.mxu0 %v1372
    %1937 = vmatprep.subr.bf16.mxu0 0
    %1938 = vmatpush1.bf16.msra.mxu0 %v1373
    %1939 = vmatprep.subr.bf16.mxu0 0
    %1940 = vmatpush1.bf16.msra.mxu0 %v1374
    %1941 = vmatprep.subr.bf16.mxu0 0
    %1942 = vmatpush1.bf16.msra.mxu0 %v1375
    %1943 = vmatprep.subr.bf16.mxu0 0
    %1944 = vmatpush1.bf16.msra.mxu0 %v1376
    %1945 = vmatprep.subr.bf16.mxu0 0
    %1946 = vmatpush1.bf16.msra.mxu0 %v1377
    %1947 = vmatprep.subr.bf16.mxu0 0
    %1948 = vmatpush1.bf16.msra.mxu0 %v1378
    %1949 = vmatprep.subr.bf16.mxu0 0
    %1950 = vmatpush1.bf16.msra.mxu0 %v1379
    %1951 = vmatprep.subr.bf16.mxu0 0
    %1952 = vmatpush1.bf16.msra.mxu0 %v1380
    %1953 = vmatprep.subr.bf16.mxu0 0
    %1954 = vmatpush1.bf16.msra.mxu0 %v1381
    %1955 = vmatprep.subr.bf16.mxu0 0
    %1956 = vmatpush1.bf16.msra.mxu0 %v1382
    %1957 = vmatprep.subr.bf16.mxu0 0
    %1958 = vmatpush1.bf16.msra.mxu0 %v1383
    %1959 = vmatprep.mubr.bf16.mxu0 %v95
    %1960 = vmatmul.mubr.bf16.gmra.mrb[0].mxu0 %v94
    %v1961 = vpop.f32.mrb[0].mxu0
    %v1962 = vadd.f32 %v1921, %v1961
    %v1963 = vpop.f32.mrb[0].mxu0
    %v1964 = vpop.f32.mrb[0].mxu0
    %v1965 = vadd.f32 %v1924, %v1964
    %v1966 = vpop.f32.mrb[0].mxu0
    %1967 = vdwg.mxu0
    %1968 = vmatprep.subr.bf16.mxu0 0
    %1969 = vmatpush1.bf16.msra.mxu0 %v1384
    %1970 = vmatprep.subr.bf16.mxu0 0
    %1971 = vmatpush1.bf16.msra.mxu0 %v1385
    %1972 = vmatprep.subr.bf16.mxu0 0
    %1973 = vmatpush1.bf16.msra.mxu0 %v1386
    %1974 = vmatprep.subr.bf16.mxu0 0
    %1975 = vmatpush1.bf16.msra.mxu0 %v1387
    %1976 = vmatprep.subr.bf16.mxu0 0
    %1977 = vmatpush1.bf16.msra.mxu0 %v1388
    %1978 = vmatprep.subr.bf16.mxu0 0
    %1979 = vmatpush1.bf16.msra.mxu0 %v1389
    %1980 = vmatprep.subr.bf16.mxu0 0
    %1981 = vmatpush1.bf16.msra.mxu0 %v1390
    %1982 = vmatprep.subr.bf16.mxu0 0
    %1983 = vmatpush1.bf16.msra.mxu0 %v1391
    %1984 = vmatprep.subr.bf16.mxu0 0
    %1985 = vmatpush1.bf16.msra.mxu0 %v1392
    %1986 = vmatprep.subr.bf16.mxu0 0
    %1987 = vmatpush1.bf16.msra.mxu0 %v1393
    %1988 = vmatprep.subr.bf16.mxu0 0
    %1989 = vmatpush1.bf16.msra.mxu0 %v1394
    %1990 = vmatprep.subr.bf16.mxu0 0
    %1991 = vmatpush1.bf16.msra.mxu0 %v1395
    %1992 = vmatprep.subr.bf16.mxu0 0
    %1993 = vmatpush1.bf16.msra.mxu0 %v1396
    %1994 = vmatprep.subr.bf16.mxu0 0
    %1995 = vmatpush1.bf16.msra.mxu0 %v1397
    %1996 = vmatprep.subr.bf16.mxu0 0
    %1997 = vmatpush1.bf16.msra.mxu0 %v1398
    %1998 = vmatprep.subr.bf16.mxu0 0
    %1999 = vmatpush1.bf16.msra.mxu0 %v1399
    %2000 = vmatprep.mubr.bf16.mxu0 %v97
    %2001 = vmatmul.mubr.bf16.gmra.mrb[0].mxu0 %v96
    %v2002 = vpop.f32.mrb[0].mxu0
    %v2003 = vadd.f32 %v1962, %v2002
    %v2004 = vpop.f32.mrb[0].mxu0
    %v2005 = vpop.f32.mrb[0].mxu0
    %v2006 = vadd.f32 %v1965, %v2005
    %v2007 = vpop.f32.mrb[0].mxu0
    %2008 = vdwg.mxu0
    %2009 = vmatprep.subr.bf16.mxu0 0
    %2010 = vmatpush1.bf16.msra.mxu0 %v1400
    %2011 = vmatprep.subr.bf16.mxu0 0
    %2012 = vmatpush1.bf16.msra.mxu0 %v1401
    %2013 = vmatprep.subr.bf16.mxu0 0
    %2014 = vmatpush1.bf16.msra.mxu0 %v1402
    %2015 = vmatprep.subr.bf16.mxu0 0
    %2016 = vmatpush1.bf16.msra.mxu0 %v1403
    %2017 = vmatprep.subr.bf16.mxu0 0
    %2018 = vmatpush1.bf16.msra.mxu0 %v1404
    %2019 = vmatprep.subr.bf16.mxu0 0
    %2020 = vmatpush1.bf16.msra.mxu0 %v1405
    %2021 = vmatprep.subr.bf16.mxu0 0
    %2022 = vmatpush1.bf16.msra.mxu0 %v1406
    %2023 = vmatprep.subr.bf16.mxu0 0
    %2024 = vmatpush1.bf16.msra.mxu0 %v1407
    %2025 = vmatprep.subr.bf16.mxu0 0
    %2026 = vmatpush1.bf16.msra.mxu0 %v1408
    %2027 = vmatprep.subr.bf16.mxu0 0
    %2028 = vmatpush1.bf16.msra.mxu0 %v1409
    %2029 = vmatprep.subr.bf16.mxu0 0
    %2030 = vmatpush1.bf16.msra.mxu0 %v1410
    %2031 = vmatprep.subr.bf16.mxu0 0
    %2032 = vmatpush1.bf16.msra.mxu0 %v1411
    %2033 = vmatprep.subr.bf16.mxu0 0
    %2034 = vmatpush1.bf16.msra.mxu0 %v1412
    %2035 = vmatprep.subr.bf16.mxu0 0
    %2036 = vmatpush1.bf16.msra.mxu0 %v1413
    %2037 = vmatprep.subr.bf16.mxu0 0
    %2038 = vmatpush1.bf16.msra.mxu0 %v1414
    %2039 = vmatprep.subr.bf16.mxu0 0
    %2040 = vmatpush1.bf16.msra.mxu0 %v1415
    %2041 = vmatprep.mubr.bf16.mxu0 %v99
    %2042 = vmatmul.mubr.bf16.gmra.mrb[0].mxu0 %v98
    %v2043 = vpop.f32.mrb[0].mxu0
    %v2044 = vadd.f32 %v2003, %v2043
    %v2045 = vpop.f32.mrb[0].mxu0
    %v2046 = vpop.f32.mrb[0].mxu0
    %v2047 = vadd.f32 %v2006, %v2046
    %v2048 = vpop.f32.mrb[0].mxu0
    %2049 = vdwg.mxu0
    %2050 = vmatprep.subr.bf16.mxu0 0
    %2051 = vmatpush1.bf16.msra.mxu0 %v1416
    %2052 = vmatprep.subr.bf16.mxu0 0
    %2053 = vmatpush1.bf16.msra.mxu0 %v1417
    %2054 = vmatprep.subr.bf16.mxu0 0
    %2055 = vmatpush1.bf16.msra.mxu0 %v1418
    %2056 = vmatprep.subr.bf16.mxu0 0
    %2057 = vmatpush1.bf16.msra.mxu0 %v1419
    %2058 = vmatprep.subr.bf16.mxu0 0
    %2059 = vmatpush1.bf16.msra.mxu0 %v1420
    %2060 = vmatprep.subr.bf16.mxu0 0
    %2061 = vmatpush1.bf16.msra.mxu0 %v1421
    %2062 = vmatprep.subr.bf16.mxu0 0
    %2063 = vmatpush1.bf16.msra.mxu0 %v1422
    %2064 = vmatprep.subr.bf16.mxu0 0
    %2065 = vmatpush1.bf16.msra.mxu0 %v1423
    %2066 = vmatprep.subr.bf16.mxu0 0
    %2067 = vmatpush1.bf16.msra.mxu0 %v1424
    %2068 = vmatprep.subr.bf16.mxu0 0
    %2069 = vmatpush1.bf16.msra.mxu0 %v1425
    %2070 = vmatprep.subr.bf16.mxu0 0
    %2071 = vmatpush1.bf16.msra.mxu0 %v1426
    %2072 = vmatprep.subr.bf16.mxu0 0
    %2073 = vmatpush1.bf16.msra.mxu0 %v1427
    %2074 = vmatprep.subr.bf16.mxu0 0
    %2075 = vmatpush1.bf16.msra.mxu0 %v1428
    %2076 = vmatprep.subr.bf16.mxu0 0
    %2077 = vmatpush1.bf16.msra.mxu0 %v1429
    %2078 = vmatprep.subr.bf16.mxu0 0
    %2079 = vmatpush1.bf16.msra.mxu0 %v1430
    %2080 = vmatprep.subr.bf16.mxu0 0
    %2081 = vmatpush1.bf16.msra.mxu0 %v1431
    %2082 = vmatprep.mubr.bf16.mxu0 %v101
    %2083 = vmatmul.mubr.bf16.gmra.mrb[0].mxu0 %v100
    %v2084 = vpop.f32.mrb[0].mxu0
    %v2085 = vadd.f32 %v2044, %v2084
    %v2086 = vpop.f32.mrb[0].mxu0
    %v2087 = vpop.f32.mrb[0].mxu0
    %v2088 = vadd.f32 %v2047, %v2087
    %v2089 = vpop.f32.mrb[0].mxu0
    %2090 = vdwg.mxu0
    %2091 = vmatprep.subr.bf16.mxu0 0
    %2092 = vmatpush1.bf16.msra.mxu0 %v1432
    %2093 = vmatprep.subr.bf16.mxu0 0
    %2094 = vmatpush1.bf16.msra.mxu0 %v1433
    %2095 = vmatprep.subr.bf16.mxu0 0
    %2096 = vmatpush1.bf16.msra.mxu0 %v1434
    %2097 = vmatprep.subr.bf16.mxu0 0
    %2098 = vmatpush1.bf16.msra.mxu0 %v1435
    %2099 = vmatprep.subr.bf16.mxu0 0
    %2100 = vmatpush1.bf16.msra.mxu0 %v1436
    %2101 = vmatprep.subr.bf16.mxu0 0
    %2102 = vmatpush1.bf16.msra.mxu0 %v1437
    %2103 = vmatprep.subr.bf16.mxu0 0
    %2104 = vmatpush1.bf16.msra.mxu0 %v1438
    %2105 = vmatprep.subr.bf16.mxu0 0
    %2106 = vmatpush1.bf16.msra.mxu0 %v1439
    %2107 = vmatprep.subr.bf16.mxu0 0
    %2108 = vmatpush1.bf16.msra.mxu0 %v1440
    %2109 = vmatprep.subr.bf16.mxu0 0
    %2110 = vmatpush1.bf16.msra.mxu0 %v1441
    %2111 = vmatprep.subr.bf16.mxu0 0
    %2112 = vmatpush1.bf16.msra.mxu0 %v1442
    %2113 = vmatprep.subr.bf16.mxu0 0
    %2114 = vmatpush1.bf16.msra.mxu0 %v1443
    %2115 = vmatprep.subr.bf16.mxu0 0
    %2116 = vmatpush1.bf16.msra.mxu0 %v1444
    %2117 = vmatprep.subr.bf16.mxu0 0
    %2118 = vmatpush1.bf16.msra.mxu0 %v1445
    %2119 = vmatprep.subr.bf16.mxu0 0
    %2120 = vmatpush1.bf16.msra.mxu0 %v1446
    %2121 = vmatprep.subr.bf16.mxu0 0
    %2122 = vmatpush1.bf16.msra.mxu0 %v1447
    %2123 = vmatprep.mubr.bf16.mxu0 %v103
    %2124 = vmatmul.mubr.bf16.gmra.mrb[0].mxu0 %v102
    %v2125 = vpop.f32.mrb[0].mxu0
    %v2126 = vadd.f32 %v2085, %v2125
    %v2127 = vpop.f32.mrb[0].mxu0
    %v2128 = vpop.f32.mrb[0].mxu0
    %v2129 = vadd.f32 %v2088, %v2128
    %v2130 = vpop.f32.mrb[0].mxu0
    %2131 = vdwg.mxu0
    %v2132 = vmax.f32 %v2126, 0.0
    %v2133 = vmax.f32 %v2129, 0.0
    %v2134 = vpack.c.bf16 %v2133, %v2132
    %v2135 = vld [vmem:[%s2] sm:$0xf]
    %v2136 = vld [vmem:[%s2 + $0x4] sm:$0xf]
    %v2137 = vld [vmem:[%s2 + $0x8] sm:$0xf]
    %v2138 = vld [vmem:[%s2 + $0xc] sm:$0xf]
    %v2139 = vld [vmem:[%s2 + $0x10] sm:$0xf]
    %v2140 = vld [vmem:[%s2 + $0x14] sm:$0xf]
    %v2141 = vld [vmem:[%s2 + $0x18] sm:$0xf]
    %v2142 = vld [vmem:[%s2 + $0x1c] sm:$0xf]
    %v2143 = vld [vmem:[%s2 + $0x20] sm:$0xf]
    %v2144 = vld [vmem:[%s2 + $0x24] sm:$0xf]
    %v2145 = vld [vmem:[%s2 + $0x28] sm:$0xf]
    %v2146 = vld [vmem:[%s2 + $0x2c] sm:$0xf]
    %v2147 = vld [vmem:[%s2 + $0x30] sm:$0xf]
    %v2148 = vld [vmem:[%s2 + $0x34] sm:$0xf]
    %v2149 = vld [vmem:[%s2 + $0x38] sm:$0xf]
    %v2150 = vld [vmem:[%s2 + $0x3c] sm:$0xf]
    %v2167 = vunpack.c.l.b16 %v2135
    %v2168 = vunpack.c.l.b16 %v2136
    %v2169 = vunpack.c.l.b16 %v2137
    %v2170 = vunpack.c.l.b16 %v2138
    %v2171 = vunpack.c.l.b16 %v2139
    %v2172 = vunpack.c.l.b16 %v2140
    %v2173 = vunpack.c.l.b16 %v2141
    %v2174 = vunpack.c.l.b16 %v2142
    %v2175 = vunpack.c.l.b16 %v2143
    %v2176 = vunpack.c.l.b16 %v2144
    %v2177 = vunpack.c.l.b16 %v2145
    %v2178 = vunpack.c.l.b16 %v2146
    %v2179 = vunpack.c.l.b16 %v2147
    %v2180 = vunpack.c.l.b16 %v2148
    %v2181 = vunpack.c.l.b16 %v2149
    %v2182 = vunpack.c.l.b16 %v2150
    %v2183 = vpack.c.b16 %v2168, %v2167
    %v2184 = vpack.c.b16 %v2170, %v2169
    %v2185 = vpack.c.b16 %v2172, %v2171
    %v2186 = vpack.c.b16 %v2174, %v2173
    %v2187 = vpack.c.b16 %v2176, %v2175
    %v2188 = vpack.c.b16 %v2178, %v2177
    %v2189 = vpack.c.b16 %v2180, %v2179
    %v2190 = vpack.c.b16 %v2182, %v2181
    %2199 = vmatprep.subr.bf16.mxu0 0
    %2200 = vmatpush1.bf16.msra.mxu0 %v2183
    %2201 = vmatprep.subr.bf16.mxu0 0
    %2202 = vmatpush1.bf16.msra.mxu0 %v2184
    %2203 = vmatprep.subr.bf16.mxu0 0
    %2204 = vmatpush1.bf16.msra.mxu0 %v2185
    %2205 = vmatprep.subr.bf16.mxu0 0
    %2206 = vmatpush1.bf16.msra.mxu0 %v2186
    %2207 = vmatprep.subr.bf16.mxu0 0
    %2208 = vmatpush1.bf16.msra.mxu0 %v2187
    %2209 = vmatprep.subr.bf16.mxu0 0
    %2210 = vmatpush1.bf16.msra.mxu0 %v2188
    %2211 = vmatprep.subr.bf16.mxu0 0
    %2212 = vmatpush1.bf16.msra.mxu0 %v2189
    %2213 = vmatprep.subr.bf16.mxu0 0
    %2214 = vmatpush1.bf16.msra.mxu0 %v2190
    %2215 = vmatprep.subr.bf16.mxu0 0
    %2216 = vmatpush1.bf16.msra.mxu0 0
    %2217 = vmatprep.subr.bf16.mxu0 0
    %2218 = vmatpush1.bf16.msra.mxu0 0
    %2219 = vmatprep.subr.bf16.mxu0 0
    %2220 = vmatpush1.bf16.msra.mxu0 0
    %2221 = vmatprep.subr.bf16.mxu0 0
    %2222 = vmatpush1.bf16.msra.mxu0 0
    %2223 = vmatprep.subr.bf16.mxu0 0
    %2224 = vmatpush1.bf16.msra.mxu0 0
    %2225 = vmatprep.subr.bf16.mxu0 0
    %2226 = vmatpush1.bf16.msra.mxu0 0
    %2227 = vmatprep.subr.bf16.mxu0 0
    %2228 = vmatpush1.bf16.msra.mxu0 0
    %2229 = vmatprep.subr.bf16.mxu0 0
    %2230 = vmatpush1.bf16.msra.mxu0 0
    %2231 = vmatprep.mubr.bf16.mxu0 0
    %2232 = vmatmul.mubr.bf16.gmra.mrb[0].mxu0 %v2134
    %v2233 = vpop.f32.mrb[0].mxu0
    %v2234 = vadd.f32 0.0, %v2233
    %v2235 = vpop.f32.mrb[0].mxu0
    %v2236 = vpop.f32.mrb[0].mxu0
    %v2237 = vadd.f32 0.0, %v2236
    %v2238 = vpop.f32.mrb[0].mxu0
    %2239 = vdwg.mxu0
    %v2240 = vmax.f32 %v2234, 0.0
    %v2241 = vmax.f32 %v2237, 0.0
    %v2242 = vpack.c.bf16 %v2241, %v2240
    %v2243 = vld [vmem:[%s3] sm:$0xf]
    %v2244 = vld [vmem:[%s3 + $0x4] sm:$0xf]
    %v2245 = vld [vmem:[%s3 + $0x8] sm:$0xf]
    %v2246 = vld [vmem:[%s3 + $0xc] sm:$0xf]
    %v2247 = vld [vmem:[%s3 + $0x10] sm:$0xf]
    %v2248 = vld [vmem:[%s3 + $0x14] sm:$0xf]
    %v2249 = vld [vmem:[%s3 + $0x18] sm:$0xf]
    %v2250 = vld [vmem:[%s3 + $0x1c] sm:$0xf]
    %v2251 = vld [vmem:[%s3 + $0x20] sm:$0xf]
    %v2252 = vld [vmem:[%s3 + $0x24] sm:$0xf]
    %v2253 = vld [vmem:[%s3 + $0x28] sm:$0xf]
    %v2254 = vld [vmem:[%s3 + $0x2c] sm:$0xf]
    %v2255 = vld [vmem:[%s3 + $0x30] sm:$0xf]
    %v2256 = vld [vmem:[%s3 + $0x34] sm:$0xf]
    %v2257 = vld [vmem:[%s3 + $0x38] sm:$0xf]
    %v2258 = vld [vmem:[%s3 + $0x3c] sm:$0xf]
    %v2275 = vunpack.c.l.b16 %v2243
    %v2276 = vunpack.c.l.b16 %v2244
    %v2277 = vunpack.c.l.b16 %v2245
    %v2278 = vunpack.c.l.b16 %v2246
    %v2279 = vunpack.c.l.b16 %v2247
    %v2280 = vunpack.c.l.b16 %v2248
    %v2281 = vunpack.c.l.b16 %v2249
    %v2282 = vunpack.c.l.b16 %v2250
    %v2283 = vunpack.c.l.b16 %v2251
    %v2284 = vunpack.c.l.b16 %v2252
    %v2285 = vunpack.c.l.b16 %v2253
    %v2286 = vunpack.c.l.b16 %v2254
    %v2287 = vunpack.c.l.b16 %v2255
    %v2288 = vunpack.c.l.b16 %v2256
    %v2289 = vunpack.c.l.b16 %v2257
    %v2290 = vunpack.c.l.b16 %v2258
    %v2291 = vpack.c.b16 %v2276, %v2275
    %v2292 = vpack.c.b16 %v2278, %v2277
    %v2293 = vpack.c.b16 %v2280, %v2279
    %v2294 = vpack.c.b16 %v2282, %v2281
    %v2295 = vpack.c.b16 %v2284, %v2283
    %v2296 = vpack.c.b16 %v2286, %v2285
    %v2297 = vpack.c.b16 %v2288, %v2287
    %v2298 = vpack.c.b16 %v2290, %v2289
    %2307 = vmatprep.subr.bf16.mxu0 0
    %2308 = vmatpush1.bf16.msra.mxu0 %v2291
    %2309 = vmatprep.subr.bf16.mxu0 0
    %2310 = vmatpush1.bf16.msra.mxu0 %v2292
    %2311 = vmatprep.subr.bf16.mxu0 0
    %2312 = vmatpush1.bf16.msra.mxu0 %v2293
    %2313 = vmatprep.subr.bf16.mxu0 0
    %2314 = vmatpush1.bf16.msra.mxu0 %v2294
    %2315 = vmatprep.subr.bf16.mxu0 0
    %2316 = vmatpush1.bf16.msra.mxu0 %v2295
    %2317 = vmatprep.subr.bf16.mxu0 0
    %2318 = vmatpush1.bf16.msra.mxu0 %v2296
    %2319 = vmatprep.subr.bf16.mxu0 0
    %2320 = vmatpush1.bf16.msra.mxu0 %v2297
    %2321 = vmatprep.subr.bf16.mxu0 0
    %2322 = vmatpush1.bf16.msra.mxu0 %v2298
    %2323 = vmatprep.subr.bf16.mxu0 0
    %2324 = vmatpush1.bf16.msra.mxu0 0
    %2325 = vmatprep.subr.bf16.mxu0 0
    %2326 = vmatpush1.bf16.msra.mxu0 0
    %2327 = vmatprep.subr.bf16.mxu0 0
    %2328 = vmatpush1.bf16.msra.mxu0 0
    %2329 = vmatprep.subr.bf16.mxu0 0
    %2330 = vmatpush1.bf16.msra.mxu0 0
    %2331 = vmatprep.subr.bf16.mxu0 0
    %2332 = vmatpush1.bf16.msra.mxu0 0
    %2333 = vmatprep.subr.bf16.mxu0 0
    %2334 = vmatpush1.bf16.msra.mxu0 0
    %2335 = vmatprep.subr.bf16.mxu0 0
    %2336 = vmatpush1.bf16.msra.mxu0 0
    %2337 = vmatprep.subr.bf16.mxu0 0
    %2338 = vmatpush1.bf16.msra.mxu0 0
    %2339 = vmatprep.mubr.bf16.mxu0 0
    %2340 = vmatmul.mubr.bf16.gmra.mrb[0].mxu0 %v2242
    %v2341 = vpop.f32.mrb[0].mxu0
    %v2342 = vadd.f32 0.0, %v2341
    %v2343 = vpop.f32.mrb[0].mxu0
    %v2344 = vpop.f32.mrb[0].mxu0
    %v2345 = vadd.f32 0.0, %v2344
    %v2346 = vpop.f32.mrb[0].mxu0
    %2347 = vdwg.mxu0
    %v2348 = vpack.c.bf16 %v2345, %v2342
    %v2350 = vunpack.c.l.b16 %v2348
    %v2351 = vunpack.c.h.b16 %v2348
    %v2352 = vpack.c.b16 %v2350, %v2350
    %v2353 = vpack.c.b16 %v2351, %v2351
    %2356 = vst [vmem:[%s4] sm:$0xf] %v2352
    %2357 = vst [vmem:[%s4 + $0x4] sm:$0xf] %v2353
    // Predicated region
    $region22: #{mlp_forward.1} parent=1 // pred_check
      _
    $region23: #{mlp_forward.1} parent=1 // pred_check_branch
      %2359 = sbr.rel (0) target = $region25
    $region24: #{mlp_forward.1} parent=1 // pred_region
      _
    $region25: #{mlp_forward.1} parent=1 // pred_fallthru
      _
    // Predicated region
    $region26: #{mlp_forward.1} parent=1 // pred_check
      _
    $region27: #{mlp_forward.1} parent=1 // pred_check_branch
      %2361 = sbr.rel (0) target = $region29
    $region28: #{mlp_forward.1} parent=1 // pred_region
      _
    $region29: #{mlp_forward.1} parent=1 // pred_fallthru
      _
    %2362 = vsyncpa [#allocation3], 1

</llo_original>
